<compile_context>
chip_gen: v7x
topology: tpu7x:2x2x1
jax: 0.10.0
libtpu: 0.0.40
codegen_flags: <defaults>
</compile_context>

<pallas_src>
import functools

import jax
import jax.numpy as jnp
from jax import lax
from jax.experimental import pallas as pl
from jax.experimental.pallas import tpu as pltpu


def _round_up(a, m):
    return ((a + m - 1) // m) * m


def _guess_num_tensorcores():
    """v7x has 2 TensorCores per chip; v5e/v6e have 1.  Safe fallback: 1."""
    try:
        kind = jax.devices()[0].device_kind.lower()
    except Exception:
        return 1
    return 2 if ("v7" in kind or "7x" in kind) else 1


def _add_edges_kernel(edge_ref, x3_ref, dist_ref, dir_ref, *, d):
    """One grid step processes TILE_E edges, entirely on vector/matrix units.

    edge_ref : VMEM int32[2, TILE_E]     row 0 = src, row 1 = dst
    x3_ref   : VMEM bf16[3*D, N]         stacked hi/mid/lo split of x.T
    dist_ref : VMEM f32[1, TILE_E]       ||r||            (edges on lanes)
    dir_ref  : VMEM f32[D, TILE_E]       r / (1 + ||r||)  (edges on lanes)
    """
    src = edge_ref[0:1, :]                     # [1, TE] int32
    dst = edge_ref[1:2, :]                     # [1, TE] int32
    n = x3_ref.shape[1]
    te = edge_ref.shape[1]

    # One-hot difference matrix M[n, e] = 1{n == src[e]} - 1{n == dst[e]},
    # built directly in bf16 (values in {-1, 0, 1} -> exact).
    node_ids = lax.broadcasted_iota(jnp.int32, (n, te), 0)            # [N, TE]
    oh = ((node_ids == src).astype(jnp.bfloat16)
          - (node_ids == dst).astype(jnp.bfloat16))                   # [N, TE]

    # Single MXU matmul against the stacked hi/mid/lo bf16 table.  Each bf16
    # chunk's gather-difference is exact (only two nonzero terms per output,
    # f32 accumulation); the cross-chunk f32 sum below rounds by <= ~1-2 ulp.
    r3 = jnp.dot(x3_ref[...], oh, preferred_element_type=jnp.float32)  # [3d, TE]
    r_t = r3[0:d, :] + r3[d:2 * d, :] + r3[2 * d:3 * d, :]             # [d, TE]

    # ||r||: one VPU multiply + one cross-sublane (XLU) reduce.
    dist2 = jnp.sum(r_t * r_t, axis=0, keepdims=True)                  # [1, TE]
    dist = jnp.sqrt(dist2)
    inv = pl.reciprocal(1.0 + dist)                                    # exact

    dist_ref[...] = dist
    dir_ref[...] = r_t * inv


def add_edges_pallas(x, edge_index, *, transpose_dir=True):
    """x: f32[N, D]; edge_index: int32[2, E] (entries must lie in [0, N)).

    Returns (edge_dist [E], edge_dir [E, D]  -- or [D, E] if transpose_dir=False).
    """
    x = x.astype(jnp.float32)
    N, D = x.shape
    E = edge_index.shape[1]

    # ---- generation-aware tile selection -------------------------------
    n_tc = _guess_num_tensorcores()
    e_128 = _round_up(E, 128)
    n_steps = max(1, min(n_tc, e_128 // 128))
    tile_e = _round_up(pl.cdiv(e_128, n_steps), 128)

    # Budget tile_e against the O(N x tile_e) one-hot intermediate (bf16) so it
    # stays well inside VMEM on every generation (v7x: 64 MiB phys / 32 scoped).
    max_onehot_bytes = 8 << 20
    max_tile = max(128, ((max_onehot_bytes // max(N, 1) // 2) // 128) * 128)
    if tile_e > max_tile:
        tile_e = max_tile
    n_steps = pl.cdiv(e_128, tile_e)
    e_pad = tile_e * n_steps

    # ---- inputs ---------------------------------------------------------
    src = edge_index[0].astype(jnp.int32)
    dst = edge_index[1].astype(jnp.int32)
    if e_pad != E:
        pad = e_pad - E
        zeros = jnp.zeros((pad,), jnp.int32)   # padded 0->0 self edges: r=0, dist=0, dir=0
        src = jnp.concatenate([src, zeros])
        dst = jnp.concatenate([dst, zeros])
    edge2 = jnp.stack([src, dst], axis=0)      # [2, e_pad] -- single packed input

    # Exact 3-way bf16 split of x.T, hoisted out of the kernel and stacked so
    # the kernel does one matmul: xt == hi + mid + lo (bitwise).
    xt = x.T                                    # [D, N]: coords on sublanes, nodes on lanes
    x_hi = xt.astype(jnp.bfloat16)
    res1 = xt - x_hi.astype(jnp.float32)
    x_mid = res1.astype(jnp.bfloat16)
    x_lo = (res1 - x_mid.astype(jnp.float32)).astype(jnp.bfloat16)
    x3 = jnp.concatenate([x_hi, x_mid, x_lo], axis=0)   # [3*D, N] bf16

    # ---- VMEM budget (explicit, per review) ------------------------------
    est = (N * tile_e * 2            # one-hot (bf16)
           + N * tile_e * 4          # iota (int32)
           + 3 * D * tile_e * 4      # r3 (f32)
           + 2 * (3 * D * N * 2)     # table (double-buffered)
           + 4 * (2 * tile_e * 4)    # edge blocks
           + 4 * ((1 + D) * tile_e * 4))  # output blocks
    vmem_limit = int(min(64 << 20, max(32 << 20, 4 * est)))

    grid = (n_steps,)
    kernel = functools.partial(_add_edges_kernel, d=D)

    dist_t, dir_t = pl.pallas_call(
        kernel,
        out_shape=(
            jax.ShapeDtypeStruct((1, e_pad), jnp.float32),
            jax.ShapeDtypeStruct((D, e_pad), jnp.float32),
        ),
        grid_spec=pltpu.PrefetchScalarGridSpec(
            num_scalar_prefetch=0,
            grid=grid,
            in_specs=[
                pl.BlockSpec((2, tile_e), lambda t: (0, t)),    # packed src/dst tile
                pl.BlockSpec((3 * D, N), lambda t: (0, 0)),     # constant bf16 table
            ],
            out_specs=[
                pl.BlockSpec((1, tile_e), lambda t: (0, t)),    # dist, edges on lanes
                pl.BlockSpec((D, tile_e), lambda t: (0, t)),    # dir,  edges on lanes
            ],
        ),
        compiler_params=pltpu.CompilerParams(
            dimension_semantics=("parallel",),   # 2 steps -> one per TC on v7x
            vmem_limit_bytes=vmem_limit,
        ),
    )(edge2, x3)

    edge_dist = dist_t[0, :E]                    # [E]
    if transpose_dir:
        edge_dir = dir_t[:, :E].T                # [E, D] (PyTorch layout)
    else:
        edge_dir = dir_t[:, :E]                  # [D, E] (lane-dense, preferred)
    return edge_dist, edge_dir


def build_knn_edge_index(x, k):
    """Deterministic fixed-k neighbor graph (static-shape stand-in for radius_graph)."""
    N = x.shape[0]
    d2 = jnp.sum((x[:, None, :] - x[None, :, :]) ** 2, axis=-1)      # [N, N]
    d2 = d2 + jnp.eye(N, dtype=x.dtype) * 1e9                        # exclude self-loops
    _, nbr = lax.top_k(-d2, k)                                       # [N, k]
    dst = jnp.repeat(jnp.arange(N, dtype=jnp.int32), k)              # target node i
    src = nbr.reshape(-1).astype(jnp.int32)                          # neighbor j
    return jnp.stack([src, dst], axis=0)                             # [2, E], E = N*k


if __name__ == "__main__":
    key = jax.random.PRNGKey(0)
    N, D, K = 128, 3, 16                    # 128 atoms, 3-D coords, 16 neighbors -> E = 2048
    x = jax.random.uniform(key, (N, D), dtype=jnp.float32) * 4.0

    edge_index = build_knn_edge_index(x, K)                          # [2, 2048]

    edge_dist, edge_dir = add_edges_pallas(x, edge_index)
    edge_dist = jax.block_until_ready(edge_dist)
    edge_dir = jax.block_until_ready(edge_dir)

    # Pure-JAX reference of the PyTorch forward semantics.
    r_ref = x[edge_index[0]] - x[edge_index[1]]
    dist_ref = jnp.linalg.norm(r_ref, axis=-1)
    dir_ref = r_ref / (1.0 + dist_ref[:, None])

    assert edge_dist.shape == (edge_index.shape[1],)
    assert edge_dir.shape == (edge_index.shape[1], D)
    assert jnp.allclose(edge_dist, dist_ref, atol=1e-5, rtol=1e-5)
    assert jnp.allclose(edge_dir, dir_ref, atol=1e-5, rtol=1e-5)

    print("KERNEL_OK")
</pallas_src>

<mosaic_0001>
module attributes {stable_mosaic.version = 11 : i64} {
  func.func @_add_edges_kernel(%arg0: i32, %arg1: memref<2x2048xi32, #tpu.memory_space<vmem>>, %arg2: memref<9x128xbf16, #tpu.memory_space<vmem>>, %arg3: memref<1x2048xf32, #tpu.memory_space<vmem>>, %arg4: memref<3x2048xf32, #tpu.memory_space<vmem>>) attributes {dimension_semantics = [#tpu.dimension_semantics<parallel>], iteration_bounds = array<i64: 1>, scalar_prefetch = 0 : i64, scratch_operands = 0 : i64, tpu.core_type = #tpu.core_type<tc>, window_params = [{transform_indices = @transform_0, window_bounds = array<i64: 2, 2048>}, {pipeline_mode = #tpu.pipeline_mode<synchronous>, transform_indices = @transform_1, window_bounds = array<i64: 9, 128>}, {transform_indices = @transform_2, window_bounds = array<i64: 1, 2048>}, {transform_indices = @transform_3, window_bounds = array<i64: 3, 2048>}]} {
    %c0 = arith.constant 0 : index
    %c0_0 = arith.constant 0 : index
    %0 = vector.load %arg1[%c0, %c0_0] : memref<2x2048xi32, #tpu.memory_space<vmem>>, vector<1x2048xi32>
    %c1 = arith.constant 1 : index
    %c0_1 = arith.constant 0 : index
    %1 = vector.load %arg1[%c1, %c0_1] : memref<2x2048xi32, #tpu.memory_space<vmem>>, vector<1x2048xi32>
    %2 = tpu.iota {dimensions = array<i32: 0>} : vector<128x2048xi32>
    %3 = vector.broadcast %0 : vector<1x2048xi32> to vector<128x2048xi32>
    %4 = arith.cmpi eq, %2, %3 : vector<128x2048xi32>
    %5 = arith.extui %4 : vector<128x2048xi1> to vector<128x2048xi32>
    %6 = arith.sitofp %5 : vector<128x2048xi32> to vector<128x2048xf32>
    %7 = arith.truncf %6 : vector<128x2048xf32> to vector<128x2048xbf16>
    %8 = vector.broadcast %1 : vector<1x2048xi32> to vector<128x2048xi32>
    %9 = arith.cmpi eq, %2, %8 : vector<128x2048xi32>
    %10 = arith.extui %9 : vector<128x2048xi1> to vector<128x2048xi32>
    %11 = arith.sitofp %10 : vector<128x2048xi32> to vector<128x2048xf32>
    %12 = arith.truncf %11 : vector<128x2048xf32> to vector<128x2048xbf16>
    %13 = arith.subf %7, %12 : vector<128x2048xbf16>
    %c0_2 = arith.constant 0 : index
    %c0_3 = arith.constant 0 : index
    %14 = vector.load %arg2[%c0_2, %c0_3] : memref<9x128xbf16, #tpu.memory_space<vmem>>, vector<9x128xbf16>
    %cst = arith.constant dense<0.000000e+00> : vector<9x2048xf32>
    %15 = tpu.matmul %14, %13, %cst {dimension_numbers = #tpu.dot_dimension_numbers<[1], [0], [0], [1], [0, 0, 1, 1], [], []>} : vector<9x128xbf16>, vector<128x2048xbf16>, vector<9x2048xf32> -> vector<9x2048xf32>
    %16 = vector.extract_strided_slice %15 {offsets = [0, 0], sizes = [3, 2048], strides = [1, 1]} : vector<9x2048xf32> to vector<3x2048xf32>
    %17 = vector.extract_strided_slice %15 {offsets = [3, 0], sizes = [3, 2048], strides = [1, 1]} : vector<9x2048xf32> to vector<3x2048xf32>
    %18 = arith.addf %16, %17 : vector<3x2048xf32>
    %19 = vector.extract_strided_slice %15 {offsets = [6, 0], sizes = [3, 2048], strides = [1, 1]} : vector<9x2048xf32> to vector<3x2048xf32>
    %20 = arith.addf %18, %19 : vector<3x2048xf32>
    %21 = arith.mulf %20, %20 : vector<3x2048xf32>
    %cst_4 = arith.constant dense<0.000000e+00> : vector<2048xf32>
    %22 = vector.multi_reduction <add>, %21, %cst_4 [0] : vector<3x2048xf32> to vector<2048xf32>
    %23 = vector.shape_cast %22 : vector<2048xf32> to vector<1x2048xf32>
    %24 = math.sqrt %23 : vector<1x2048xf32>
    %cst_5 = arith.constant 1.000000e+00 : f32
    %25 = vector.broadcast %cst_5 : f32 to vector<1x2048xf32>
    %26 = arith.addf %25, %24 : vector<1x2048xf32>
    %27 = tpu.reciprocal %26 : vector<1x2048xf32> -> vector<1x2048xf32>
    %c0_6 = arith.constant 0 : index
    %c0_7 = arith.constant 0 : index
    %28 = vector.load %arg3[%c0_6, %c0_7] : memref<1x2048xf32, #tpu.memory_space<vmem>>, vector<1x2048xf32>
    tpu.vector_store %arg3[%c0_6, %c0_7], %24 {strides = array<i32>} : memref<1x2048xf32, #tpu.memory_space<vmem>>, vector<1x2048xf32>,
    %29 = vector.broadcast %27 : vector<1x2048xf32> to vector<3x2048xf32>
    %30 = arith.mulf %20, %29 : vector<3x2048xf32>
    %c0_8 = arith.constant 0 : index
    %c0_9 = arith.constant 0 : index
    %31 = vector.load %arg4[%c0_8, %c0_9] : memref<3x2048xf32, #tpu.memory_space<vmem>>, vector<3x2048xf32>
    tpu.vector_store %arg4[%c0_8, %c0_9], %30 {strides = array<i32>} : memref<3x2048xf32, #tpu.memory_space<vmem>>, vector<3x2048xf32>,
    return
  }
  func.func @transform_0(%arg0: i32) -> (i32, i32) {
    %c0_i32 = arith.constant 0 : i32
    %c0_i32_0 = arith.constant 0 : i32
    return %c0_i32, %arg0 : i32, i32
  }
  func.func @transform_1(%arg0: i32) -> (i32, i32) {
    %c0_i32 = arith.constant 0 : i32
    %c0_i32_0 = arith.constant 0 : i32
    %c0_i32_1 = arith.constant 0 : i32
    return %c0_i32, %c0_i32_0 : i32, i32
  }
  func.func @transform_2(%arg0: i32) -> (i32, i32) {
    %c0_i32 = arith.constant 0 : i32
    %c0_i32_0 = arith.constant 0 : i32
    return %c0_i32, %arg0 : i32, i32
  }
  func.func @transform_3(%arg0: i32) -> (i32, i32) {
    %c0_i32 = arith.constant 0 : i32
    %c0_i32_0 = arith.constant 0 : i32
    return %c0_i32, %arg0 : i32, i32
  }
}

</mosaic_0001>

<llo_original>
// kernel: tpu_custom_call.1
$region0: #{tpu_custom_call.1}
  #allocation0 [shape = 'u32[]', space=smem, size = 0x4, offset = 0x4, fixed_abs, tag = 'smem constant byte address 0x4 - core index']
  #allocation1 [shape = 'u32[144,128]{1,0:T(1,128)}', space=vmem, size = 0x12000, scoped, tag = 'internal scratch']
  %s0 = inlined_call_operand.hbm [shape: s32[2,2048], index: 0, kind: input, shape index: {}]
  %s1 = inlined_call_operand.hbm [shape: bf16[9,128], index: 1, kind: input, shape index: {}]
  %s2 = inlined_call_operand.hbm [shape: f32[1,2048], index: 2, kind: output, shape index: {0}]
  %s3 = inlined_call_operand.hbm [shape: f32[3,2048], index: 3, kind: output, shape index: {1}]
  %4 = xla_tuple %s2, %s3
  %s5 = sld [smem:[#allocation0]]
  $region34: #{tpu_custom_call.1} parent=0
    _
  %s7 = ssub.s32 1, %s5
  %s8 = scalar_select 0, %s7, %s5
  $region1: #{tpu_custom_call.1} parent=0
    #allocation2 [shape = 'u8[16384]{0}', space=vmem, size = 0x4000, scoped, tag = 'input window, operand 0, single buffered']
    #allocation3 [shape = 's32[1]{0}', space=sflag, size = 0x4, scoped, tag = 'scoped memory for tpu_custom_call.1']
    #allocation4 [shape = 's32[1]{0}', space=sflag, size = 0x4, scoped, tag = 'scoped memory for tpu_custom_call.1']
    #allocation5 [shape = 'u8[4096]{0}', space=vmem, size = 0x1000, scoped, tag = 'input window, operand 1, single buffered']
    #allocation6 [shape = 's32[1]{0}', space=sflag, size = 0x4, scoped, tag = 'scoped memory for tpu_custom_call.1']
    #allocation7 [shape = 'u8[8192]{0}', space=vmem, size = 0x2000, scoped, tag = 'output window, operand 0, single buffered']
    #allocation8 [shape = 'u8[32768]{0}', space=vmem, size = 0x8000, scoped, tag = 'output window, operand 1, single buffered']
    #allocation9 [shape = 's32[1]{0}', space=sflag, size = 0x4, scoped, tag = 'scoped memory for tpu_custom_call.1']
    %9 = vsyncpa [#allocation3], 0
    %10 = vsyncpa [#allocation6], 0
    %11 = vsyncpa [#allocation4], 0
    %12 = vsyncpa [#allocation9], 0
    // Predicated region
    $region2: #{tpu_custom_call.1} parent=1 // pred_check
      _
    $region3: #{tpu_custom_call.1} parent=1 // pred_check_branch
      %14 = sbr.rel (0) target = $region5
    $region4: #{tpu_custom_call.1} parent=1 // pred_region
      %s16 = ssub.s32 512, 512
      %17 = vsyncadd [#allocation3], %s16
      %s19 = sshll.u32 [#allocation2], 4
      %s20 = int_to_ptr.vmem [resolvable:$true] %s19
      %22 = dma.hbm_to_vmem [thread:$0]  %s0, 512, %s20, [#allocation3]
    $region5: #{tpu_custom_call.1} parent=1 // pred_fallthru
      _
    // Predicated region
    $region6: #{tpu_custom_call.1} parent=1 // pred_check
      _
    $region7: #{tpu_custom_call.1} parent=1 // pred_check_branch
      %24 = sbr.rel (0) target = $region9
    $region8: #{tpu_custom_call.1} parent=1 // pred_region
      %s26 = ssub.s32 128, 128
      %27 = vsyncadd [#allocation6], %s26
      %s28 = sshll.u32 [#allocation5], 4
      %s29 = int_to_ptr.vmem [resolvable:$true] %s28
      %34 = dma.hbm_to_vmem [thread:$0]  %s1, 128, %s29, [#allocation6], 64, 64, 4
    $region9: #{tpu_custom_call.1} parent=1 // pred_fallthru
      _
    // Predicated region
    $region10: #{tpu_custom_call.1} parent=1 // pred_check
      _
    $region11: #{tpu_custom_call.1} parent=1 // pred_check_branch
      %36 = sbr.rel (0) target = $region13
    $region12: #{tpu_custom_call.1} parent=1 // pred_region
      %37 = dma.done [#allocation3], 512
    $region13: #{tpu_custom_call.1} parent=1 // pred_fallthru
      _
    // Predicated region
    $region14: #{tpu_custom_call.1} parent=1 // pred_check
      _
    $region15: #{tpu_custom_call.1} parent=1 // pred_check_branch
      %39 = sbr.rel (0) target = $region17
    $region16: #{tpu_custom_call.1} parent=1 // pred_region
      %40 = dma.done [#allocation6], 128
    $region17: #{tpu_custom_call.1} parent=1 // pred_fallthru
      _
    %v42 = vld [vmem:[#allocation2] ss:$2 sm:$0xff]
    %s43 = scalar_lea.vmem [#allocation2], 16
    %v44 = vld [vmem:[%s43] ss:$2 sm:$0xff]
    %s45 = scalar_lea.vmem [#allocation2], 1
    %v46 = vld [vmem:[%s45] ss:$2 sm:$0xff]
    %s47 = scalar_lea.vmem [#allocation2], 17
    %v48 = vld [vmem:[%s47] ss:$2 sm:$0xff]
    %v49 = vlaneseq
    %v50 = vshrl.u32 %v49, 7
    %v51 = vadd.s32 %v50, 8
    %v52 = vadd.s32 %v50, 16
    %v53 = vadd.s32 %v50, 24
    %v54 = vadd.s32 %v50, 32
    %v55 = vadd.s32 %v50, 40
    %v56 = vadd.s32 %v50, 48
    %v57 = vadd.s32 %v50, 56
    %v58 = vadd.s32 %v50, 64
    %v59 = vadd.s32 %v50, 72
    %v60 = vadd.s32 %v50, 80
    %v61 = vadd.s32 %v50, 88
    %v62 = vadd.s32 %v50, 96
    %v63 = vadd.s32 %v50, 104
    %v64 = vadd.s32 %v50, 112
    %v65 = vadd.s32 %v50, 120
    %v66 = vlaneseq
    %v67 = vshrl.u32 %v66, 7
    %v68 = vsub.s32 0, %v67
    %v69 = vrot.slane %v42, %v68
    %v70 = vlaneseq
    %v71 = vshrl.u32 %v70, 7
    %v72 = vsub.s32 1, %v71
    %v73 = vrot.slane %v42, %v72
    %v74 = vlaneseq
    %v75 = vshrl.u32 %v74, 7
    %v76 = vsub.s32 2, %v75
    %v77 = vrot.slane %v42, %v76
    %v78 = vlaneseq
    %v79 = vshrl.u32 %v78, 7
    %v80 = vsub.s32 3, %v79
    %v81 = vrot.slane %v42, %v80
    %v82 = vlaneseq
    %v83 = vshrl.u32 %v82, 7
    %v84 = vsub.s32 4, %v83
    %v85 = vrot.slane %v42, %v84
    %v86 = vlaneseq
    %v87 = vshrl.u32 %v86, 7
    %v88 = vsub.s32 5, %v87
    %v89 = vrot.slane %v42, %v88
    %v90 = vlaneseq
    %v91 = vshrl.u32 %v90, 7
    %v92 = vsub.s32 6, %v91
    %v93 = vrot.slane %v42, %v92
    %v94 = vlaneseq
    %v95 = vshrl.u32 %v94, 7
    %v96 = vsub.s32 7, %v95
    %v97 = vrot.slane %v42, %v96
    %v98 = vlaneseq
    %v99 = vshrl.u32 %v98, 7
    %v100 = vsub.s32 0, %v99
    %v101 = vrot.slane %v44, %v100
    %v102 = vlaneseq
    %v103 = vshrl.u32 %v102, 7
    %v104 = vsub.s32 1, %v103
    %v105 = vrot.slane %v44, %v104
    %v106 = vlaneseq
    %v107 = vshrl.u32 %v106, 7
    %v108 = vsub.s32 2, %v107
    %v109 = vrot.slane %v44, %v108
    %v110 = vlaneseq
    %v111 = vshrl.u32 %v110, 7
    %v112 = vsub.s32 3, %v111
    %v113 = vrot.slane %v44, %v112
    %v114 = vlaneseq
    %v115 = vshrl.u32 %v114, 7
    %v116 = vsub.s32 4, %v115
    %v117 = vrot.slane %v44, %v116
    %v118 = vlaneseq
    %v119 = vshrl.u32 %v118, 7
    %v120 = vsub.s32 5, %v119
    %v121 = vrot.slane %v44, %v120
    %v122 = vlaneseq
    %v123 = vshrl.u32 %v122, 7
    %v124 = vsub.s32 6, %v123
    %v125 = vrot.slane %v44, %v124
    %v126 = vlaneseq
    %v127 = vshrl.u32 %v126, 7
    %v128 = vsub.s32 7, %v127
    %v129 = vrot.slane %v44, %v128
    %vm130 = vcmp.eq.s32.totalorder %v50, %v69
    %vm131 = vcmp.eq.s32.totalorder %v50, %v73
    %vm132 = vcmp.eq.s32.totalorder %v50, %v77
    %vm133 = vcmp.eq.s32.totalorder %v50, %v81
    %vm134 = vcmp.eq.s32.totalorder %v50, %v85
    %vm135 = vcmp.eq.s32.totalorder %v50, %v89
    %vm136 = vcmp.eq.s32.totalorder %v50, %v93
    %vm137 = vcmp.eq.s32.totalorder %v50, %v97
    %vm138 = vcmp.eq.s32.totalorder %v50, %v101
    %vm139 = vcmp.eq.s32.totalorder %v50, %v105
    %vm140 = vcmp.eq.s32.totalorder %v50, %v109
    %vm141 = vcmp.eq.s32.totalorder %v50, %v113
    %vm142 = vcmp.eq.s32.totalorder %v50, %v117
    %vm143 = vcmp.eq.s32.totalorder %v50, %v121
    %vm144 = vcmp.eq.s32.totalorder %v50, %v125
    %vm145 = vcmp.eq.s32.totalorder %v50, %v129
    %vm146 = vcmp.eq.s32.totalorder %v51, %v69
    %vm147 = vcmp.eq.s32.totalorder %v51, %v73
    %vm148 = vcmp.eq.s32.totalorder %v51, %v77
    %vm149 = vcmp.eq.s32.totalorder %v51, %v81
    %vm150 = vcmp.eq.s32.totalorder %v51, %v85
    %vm151 = vcmp.eq.s32.totalorder %v51, %v89
    %vm152 = vcmp.eq.s32.totalorder %v51, %v93
    %vm153 = vcmp.eq.s32.totalorder %v51, %v97
    %vm154 = vcmp.eq.s32.totalorder %v51, %v101
    %vm155 = vcmp.eq.s32.totalorder %v51, %v105
    %vm156 = vcmp.eq.s32.totalorder %v51, %v109
    %vm157 = vcmp.eq.s32.totalorder %v51, %v113
    %vm158 = vcmp.eq.s32.totalorder %v51, %v117
    %vm159 = vcmp.eq.s32.totalorder %v51, %v121
    %vm160 = vcmp.eq.s32.totalorder %v51, %v125
    %vm161 = vcmp.eq.s32.totalorder %v51, %v129
    %vm162 = vcmp.eq.s32.totalorder %v52, %v69
    %vm163 = vcmp.eq.s32.totalorder %v52, %v73
    %vm164 = vcmp.eq.s32.totalorder %v52, %v77
    %vm165 = vcmp.eq.s32.totalorder %v52, %v81
    %vm166 = vcmp.eq.s32.totalorder %v52, %v85
    %vm167 = vcmp.eq.s32.totalorder %v52, %v89
    %vm168 = vcmp.eq.s32.totalorder %v52, %v93
    %vm169 = vcmp.eq.s32.totalorder %v52, %v97
    %vm170 = vcmp.eq.s32.totalorder %v52, %v101
    %vm171 = vcmp.eq.s32.totalorder %v52, %v105
    %vm172 = vcmp.eq.s32.totalorder %v52, %v109
    %vm173 = vcmp.eq.s32.totalorder %v52, %v113
    %vm174 = vcmp.eq.s32.totalorder %v52, %v117
    %vm175 = vcmp.eq.s32.totalorder %v52, %v121
    %vm176 = vcmp.eq.s32.totalorder %v52, %v125
    %vm177 = vcmp.eq.s32.totalorder %v52, %v129
    %vm178 = vcmp.eq.s32.totalorder %v53, %v69
    %vm179 = vcmp.eq.s32.totalorder %v53, %v73
    %vm180 = vcmp.eq.s32.totalorder %v53, %v77
    %vm181 = vcmp.eq.s32.totalorder %v53, %v81
    %vm182 = vcmp.eq.s32.totalorder %v53, %v85
    %vm183 = vcmp.eq.s32.totalorder %v53, %v89
    %vm184 = vcmp.eq.s32.totalorder %v53, %v93
    %vm185 = vcmp.eq.s32.totalorder %v53, %v97
    %vm186 = vcmp.eq.s32.totalorder %v53, %v101
    %vm187 = vcmp.eq.s32.totalorder %v53, %v105
    %vm188 = vcmp.eq.s32.totalorder %v53, %v109
    %vm189 = vcmp.eq.s32.totalorder %v53, %v113
    %vm190 = vcmp.eq.s32.totalorder %v53, %v117
    %vm191 = vcmp.eq.s32.totalorder %v53, %v121
    %vm192 = vcmp.eq.s32.totalorder %v53, %v125
    %vm193 = vcmp.eq.s32.totalorder %v53, %v129
    %vm194 = vcmp.eq.s32.totalorder %v54, %v69
    %vm195 = vcmp.eq.s32.totalorder %v54, %v73
    %vm196 = vcmp.eq.s32.totalorder %v54, %v77
    %vm197 = vcmp.eq.s32.totalorder %v54, %v81
    %vm198 = vcmp.eq.s32.totalorder %v54, %v85
    %vm199 = vcmp.eq.s32.totalorder %v54, %v89
    %vm200 = vcmp.eq.s32.totalorder %v54, %v93
    %vm201 = vcmp.eq.s32.totalorder %v54, %v97
    %vm202 = vcmp.eq.s32.totalorder %v54, %v101
    %vm203 = vcmp.eq.s32.totalorder %v54, %v105
    %vm204 = vcmp.eq.s32.totalorder %v54, %v109
    %vm205 = vcmp.eq.s32.totalorder %v54, %v113
    %vm206 = vcmp.eq.s32.totalorder %v54, %v117
    %vm207 = vcmp.eq.s32.totalorder %v54, %v121
    %vm208 = vcmp.eq.s32.totalorder %v54, %v125
    %vm209 = vcmp.eq.s32.totalorder %v54, %v129
    %vm210 = vcmp.eq.s32.totalorder %v55, %v69
    %vm211 = vcmp.eq.s32.totalorder %v55, %v73
    %vm212 = vcmp.eq.s32.totalorder %v55, %v77
    %vm213 = vcmp.eq.s32.totalorder %v55, %v81
    %vm214 = vcmp.eq.s32.totalorder %v55, %v85
    %vm215 = vcmp.eq.s32.totalorder %v55, %v89
    %vm216 = vcmp.eq.s32.totalorder %v55, %v93
    %vm217 = vcmp.eq.s32.totalorder %v55, %v97
    %vm218 = vcmp.eq.s32.totalorder %v55, %v101
    %vm219 = vcmp.eq.s32.totalorder %v55, %v105
    %vm220 = vcmp.eq.s32.totalorder %v55, %v109
    %vm221 = vcmp.eq.s32.totalorder %v55, %v113
    %vm222 = vcmp.eq.s32.totalorder %v55, %v117
    %vm223 = vcmp.eq.s32.totalorder %v55, %v121
    %vm224 = vcmp.eq.s32.totalorder %v55, %v125
    %vm225 = vcmp.eq.s32.totalorder %v55, %v129
    %vm226 = vcmp.eq.s32.totalorder %v56, %v69
    %vm227 = vcmp.eq.s32.totalorder %v56, %v73
    %vm228 = vcmp.eq.s32.totalorder %v56, %v77
    %vm229 = vcmp.eq.s32.totalorder %v56, %v81
    %vm230 = vcmp.eq.s32.totalorder %v56, %v85
    %vm231 = vcmp.eq.s32.totalorder %v56, %v89
    %vm232 = vcmp.eq.s32.totalorder %v56, %v93
    %vm233 = vcmp.eq.s32.totalorder %v56, %v97
    %vm234 = vcmp.eq.s32.totalorder %v56, %v101
    %vm235 = vcmp.eq.s32.totalorder %v56, %v105
    %vm236 = vcmp.eq.s32.totalorder %v56, %v109
    %vm237 = vcmp.eq.s32.totalorder %v56, %v113
    %vm238 = vcmp.eq.s32.totalorder %v56, %v117
    %vm239 = vcmp.eq.s32.totalorder %v56, %v121
    %vm240 = vcmp.eq.s32.totalorder %v56, %v125
    %vm241 = vcmp.eq.s32.totalorder %v56, %v129
    %vm242 = vcmp.eq.s32.totalorder %v57, %v69
    %vm243 = vcmp.eq.s32.totalorder %v57, %v73
    %vm244 = vcmp.eq.s32.totalorder %v57, %v77
    %vm245 = vcmp.eq.s32.totalorder %v57, %v81
    %vm246 = vcmp.eq.s32.totalorder %v57, %v85
    %vm247 = vcmp.eq.s32.totalorder %v57, %v89
    %vm248 = vcmp.eq.s32.totalorder %v57, %v93
    %vm249 = vcmp.eq.s32.totalorder %v57, %v97
    %vm250 = vcmp.eq.s32.totalorder %v57, %v101
    %vm251 = vcmp.eq.s32.totalorder %v57, %v105
    %vm252 = vcmp.eq.s32.totalorder %v57, %v109
    %vm253 = vcmp.eq.s32.totalorder %v57, %v113
    %vm254 = vcmp.eq.s32.totalorder %v57, %v117
    %vm255 = vcmp.eq.s32.totalorder %v57, %v121
    %vm256 = vcmp.eq.s32.totalorder %v57, %v125
    %vm257 = vcmp.eq.s32.totalorder %v57, %v129
    %vm258 = vcmp.eq.s32.totalorder %v58, %v69
    %vm259 = vcmp.eq.s32.totalorder %v58, %v73
    %vm260 = vcmp.eq.s32.totalorder %v58, %v77
    %vm261 = vcmp.eq.s32.totalorder %v58, %v81
    %vm262 = vcmp.eq.s32.totalorder %v58, %v85
    %vm263 = vcmp.eq.s32.totalorder %v58, %v89
    %vm264 = vcmp.eq.s32.totalorder %v58, %v93
    %vm265 = vcmp.eq.s32.totalorder %v58, %v97
    %vm266 = vcmp.eq.s32.totalorder %v58, %v101
    %vm267 = vcmp.eq.s32.totalorder %v58, %v105
    %vm268 = vcmp.eq.s32.totalorder %v58, %v109
    %vm269 = vcmp.eq.s32.totalorder %v58, %v113
    %vm270 = vcmp.eq.s32.totalorder %v58, %v117
    %vm271 = vcmp.eq.s32.totalorder %v58, %v121
    %vm272 = vcmp.eq.s32.totalorder %v58, %v125
    %vm273 = vcmp.eq.s32.totalorder %v58, %v129
    %vm274 = vcmp.eq.s32.totalorder %v59, %v69
    %vm275 = vcmp.eq.s32.totalorder %v59, %v73
    %vm276 = vcmp.eq.s32.totalorder %v59, %v77
    %vm277 = vcmp.eq.s32.totalorder %v59, %v81
    %vm278 = vcmp.eq.s32.totalorder %v59, %v85
    %vm279 = vcmp.eq.s32.totalorder %v59, %v89
    %vm280 = vcmp.eq.s32.totalorder %v59, %v93
    %vm281 = vcmp.eq.s32.totalorder %v59, %v97
    %vm282 = vcmp.eq.s32.totalorder %v59, %v101
    %vm283 = vcmp.eq.s32.totalorder %v59, %v105
    %vm284 = vcmp.eq.s32.totalorder %v59, %v109
    %vm285 = vcmp.eq.s32.totalorder %v59, %v113
    %vm286 = vcmp.eq.s32.totalorder %v59, %v117
    %vm287 = vcmp.eq.s32.totalorder %v59, %v121
    %vm288 = vcmp.eq.s32.totalorder %v59, %v125
    %vm289 = vcmp.eq.s32.totalorder %v59, %v129
    %vm290 = vcmp.eq.s32.totalorder %v60, %v69
    %vm291 = vcmp.eq.s32.totalorder %v60, %v73
    %vm292 = vcmp.eq.s32.totalorder %v60, %v77
    %vm293 = vcmp.eq.s32.totalorder %v60, %v81
    %vm294 = vcmp.eq.s32.totalorder %v60, %v85
    %vm295 = vcmp.eq.s32.totalorder %v60, %v89
    %vm296 = vcmp.eq.s32.totalorder %v60, %v93
    %vm297 = vcmp.eq.s32.totalorder %v60, %v97
    %vm298 = vcmp.eq.s32.totalorder %v60, %v101
    %vm299 = vcmp.eq.s32.totalorder %v60, %v105
    %vm300 = vcmp.eq.s32.totalorder %v60, %v109
    %vm301 = vcmp.eq.s32.totalorder %v60, %v113
    %vm302 = vcmp.eq.s32.totalorder %v60, %v117
    %vm303 = vcmp.eq.s32.totalorder %v60, %v121
    %vm304 = vcmp.eq.s32.totalorder %v60, %v125
    %vm305 = vcmp.eq.s32.totalorder %v60, %v129
    %vm306 = vcmp.eq.s32.totalorder %v61, %v69
    %vm307 = vcmp.eq.s32.totalorder %v61, %v73
    %vm308 = vcmp.eq.s32.totalorder %v61, %v77
    %vm309 = vcmp.eq.s32.totalorder %v61, %v81
    %vm310 = vcmp.eq.s32.totalorder %v61, %v85
    %vm311 = vcmp.eq.s32.totalorder %v61, %v89
    %vm312 = vcmp.eq.s32.totalorder %v61, %v93
    %vm313 = vcmp.eq.s32.totalorder %v61, %v97
    %vm314 = vcmp.eq.s32.totalorder %v61, %v101
    %vm315 = vcmp.eq.s32.totalorder %v61, %v105
    %vm316 = vcmp.eq.s32.totalorder %v61, %v109
    %vm317 = vcmp.eq.s32.totalorder %v61, %v113
    %vm318 = vcmp.eq.s32.totalorder %v61, %v117
    %vm319 = vcmp.eq.s32.totalorder %v61, %v121
    %vm320 = vcmp.eq.s32.totalorder %v61, %v125
    %vm321 = vcmp.eq.s32.totalorder %v61, %v129
    %vm322 = vcmp.eq.s32.totalorder %v62, %v69
    %vm323 = vcmp.eq.s32.totalorder %v62, %v73
    %vm324 = vcmp.eq.s32.totalorder %v62, %v77
    %vm325 = vcmp.eq.s32.totalorder %v62, %v81
    %vm326 = vcmp.eq.s32.totalorder %v62, %v85
    %vm327 = vcmp.eq.s32.totalorder %v62, %v89
    %vm328 = vcmp.eq.s32.totalorder %v62, %v93
    %vm329 = vcmp.eq.s32.totalorder %v62, %v97
    %vm330 = vcmp.eq.s32.totalorder %v62, %v101
    %vm331 = vcmp.eq.s32.totalorder %v62, %v105
    %vm332 = vcmp.eq.s32.totalorder %v62, %v109
    %vm333 = vcmp.eq.s32.totalorder %v62, %v113
    %vm334 = vcmp.eq.s32.totalorder %v62, %v117
    %vm335 = vcmp.eq.s32.totalorder %v62, %v121
    %vm336 = vcmp.eq.s32.totalorder %v62, %v125
    %vm337 = vcmp.eq.s32.totalorder %v62, %v129
    %vm338 = vcmp.eq.s32.totalorder %v63, %v69
    %vm339 = vcmp.eq.s32.totalorder %v63, %v73
    %vm340 = vcmp.eq.s32.totalorder %v63, %v77
    %vm341 = vcmp.eq.s32.totalorder %v63, %v81
    %vm342 = vcmp.eq.s32.totalorder %v63, %v85
    %vm343 = vcmp.eq.s32.totalorder %v63, %v89
    %vm344 = vcmp.eq.s32.totalorder %v63, %v93
    %vm345 = vcmp.eq.s32.totalorder %v63, %v97
    %vm346 = vcmp.eq.s32.totalorder %v63, %v101
    %vm347 = vcmp.eq.s32.totalorder %v63, %v105
    %vm348 = vcmp.eq.s32.totalorder %v63, %v109
    %vm349 = vcmp.eq.s32.totalorder %v63, %v113
    %vm350 = vcmp.eq.s32.totalorder %v63, %v117
    %vm351 = vcmp.eq.s32.totalorder %v63, %v121
    %vm352 = vcmp.eq.s32.totalorder %v63, %v125
    %vm353 = vcmp.eq.s32.totalorder %v63, %v129
    %vm354 = vcmp.eq.s32.totalorder %v64, %v69
    %vm355 = vcmp.eq.s32.totalorder %v64, %v73
    %vm356 = vcmp.eq.s32.totalorder %v64, %v77
    %vm357 = vcmp.eq.s32.totalorder %v64, %v81
    %vm358 = vcmp.eq.s32.totalorder %v64, %v85
    %vm359 = vcmp.eq.s32.totalorder %v64, %v89
    %vm360 = vcmp.eq.s32.totalorder %v64, %v93
    %vm361 = vcmp.eq.s32.totalorder %v64, %v97
    %vm362 = vcmp.eq.s32.totalorder %v64, %v101
    %vm363 = vcmp.eq.s32.totalorder %v64, %v105
    %vm364 = vcmp.eq.s32.totalorder %v64, %v109
    %vm365 = vcmp.eq.s32.totalorder %v64, %v113
    %vm366 = vcmp.eq.s32.totalorder %v64, %v117
    %vm367 = vcmp.eq.s32.totalorder %v64, %v121
    %vm368 = vcmp.eq.s32.totalorder %v64, %v125
    %vm369 = vcmp.eq.s32.totalorder %v64, %v129
    %vm370 = vcmp.eq.s32.totalorder %v65, %v69
    %vm371 = vcmp.eq.s32.totalorder %v65, %v73
    %vm372 = vcmp.eq.s32.totalorder %v65, %v77
    %vm373 = vcmp.eq.s32.totalorder %v65, %v81
    %vm374 = vcmp.eq.s32.totalorder %v65, %v85
    %vm375 = vcmp.eq.s32.totalorder %v65, %v89
    %vm376 = vcmp.eq.s32.totalorder %v65, %v93
    %vm377 = vcmp.eq.s32.totalorder %v65, %v97
    %vm378 = vcmp.eq.s32.totalorder %v65, %v101
    %vm379 = vcmp.eq.s32.totalorder %v65, %v105
    %vm380 = vcmp.eq.s32.totalorder %v65, %v109
    %vm381 = vcmp.eq.s32.totalorder %v65, %v113
    %vm382 = vcmp.eq.s32.totalorder %v65, %v117
    %vm383 = vcmp.eq.s32.totalorder %v65, %v121
    %vm384 = vcmp.eq.s32.totalorder %v65, %v125
    %vm385 = vcmp.eq.s32.totalorder %v65, %v129
    %v386 = vsel %vm130, 1, 0
    %v387 = vsel %vm131, 1, 0
    %v388 = vsel %vm132, 1, 0
    %v389 = vsel %vm133, 1, 0
    %v390 = vsel %vm134, 1, 0
    %v391 = vsel %vm135, 1, 0
    %v392 = vsel %vm136, 1, 0
    %v393 = vsel %vm137, 1, 0
    %v394 = vsel %vm138, 1, 0
    %v395 = vsel %vm139, 1, 0
    %v396 = vsel %vm140, 1, 0
    %v397 = vsel %vm141, 1, 0
    %v398 = vsel %vm142, 1, 0
    %v399 = vsel %vm143, 1, 0
    %v400 = vsel %vm144, 1, 0
    %v401 = vsel %vm145, 1, 0
    %v402 = vsel %vm146, 1, 0
    %v403 = vsel %vm147, 1, 0
    %v404 = vsel %vm148, 1, 0
    %v405 = vsel %vm149, 1, 0
    %v406 = vsel %vm150, 1, 0
    %v407 = vsel %vm151, 1, 0
    %v408 = vsel %vm152, 1, 0
    %v409 = vsel %vm153, 1, 0
    %v410 = vsel %vm154, 1, 0
    %v411 = vsel %vm155, 1, 0
    %v412 = vsel %vm156, 1, 0
    %v413 = vsel %vm157, 1, 0
    %v414 = vsel %vm158, 1, 0
    %v415 = vsel %vm159, 1, 0
    %v416 = vsel %vm160, 1, 0
    %v417 = vsel %vm161, 1, 0
    %v418 = vsel %vm162, 1, 0
    %v419 = vsel %vm163, 1, 0
    %v420 = vsel %vm164, 1, 0
    %v421 = vsel %vm165, 1, 0
    %v422 = vsel %vm166, 1, 0
    %v423 = vsel %vm167, 1, 0
    %v424 = vsel %vm168, 1, 0
    %v425 = vsel %vm169, 1, 0
    %v426 = vsel %vm170, 1, 0
    %v427 = vsel %vm171, 1, 0
    %v428 = vsel %vm172, 1, 0
    %v429 = vsel %vm173, 1, 0
    %v430 = vsel %vm174, 1, 0
    %v431 = vsel %vm175, 1, 0
    %v432 = vsel %vm176, 1, 0
    %v433 = vsel %vm177, 1, 0
    %v434 = vsel %vm178, 1, 0
    %v435 = vsel %vm179, 1, 0
    %v436 = vsel %vm180, 1, 0
    %v437 = vsel %vm181, 1, 0
    %v438 = vsel %vm182, 1, 0
    %v439 = vsel %vm183, 1, 0
    %v440 = vsel %vm184, 1, 0
    %v441 = vsel %vm185, 1, 0
    %v442 = vsel %vm186, 1, 0
    %v443 = vsel %vm187, 1, 0
    %v444 = vsel %vm188, 1, 0
    %v445 = vsel %vm189, 1, 0
    %v446 = vsel %vm190, 1, 0
    %v447 = vsel %vm191, 1, 0
    %v448 = vsel %vm192, 1, 0
    %v449 = vsel %vm193, 1, 0
    %v450 = vsel %vm194, 1, 0
    %v451 = vsel %vm195, 1, 0
    %v452 = vsel %vm196, 1, 0
    %v453 = vsel %vm197, 1, 0
    %v454 = vsel %vm198, 1, 0
    %v455 = vsel %vm199, 1, 0
    %v456 = vsel %vm200, 1, 0
    %v457 = vsel %vm201, 1, 0
    %v458 = vsel %vm202, 1, 0
    %v459 = vsel %vm203, 1, 0
    %v460 = vsel %vm204, 1, 0
    %v461 = vsel %vm205, 1, 0
    %v462 = vsel %vm206, 1, 0
    %v463 = vsel %vm207, 1, 0
    %v464 = vsel %vm208, 1, 0
    %v465 = vsel %vm209, 1, 0
    %v466 = vsel %vm210, 1, 0
    %v467 = vsel %vm211, 1, 0
    %v468 = vsel %vm212, 1, 0
    %v469 = vsel %vm213, 1, 0
    %v470 = vsel %vm214, 1, 0
    %v471 = vsel %vm215, 1, 0
    %v472 = vsel %vm216, 1, 0
    %v473 = vsel %vm217, 1, 0
    %v474 = vsel %vm218, 1, 0
    %v475 = vsel %vm219, 1, 0
    %v476 = vsel %vm220, 1, 0
    %v477 = vsel %vm221, 1, 0
    %v478 = vsel %vm222, 1, 0
    %v479 = vsel %vm223, 1, 0
    %v480 = vsel %vm224, 1, 0
    %v481 = vsel %vm225, 1, 0
    %v482 = vsel %vm226, 1, 0
    %v483 = vsel %vm227, 1, 0
    %v484 = vsel %vm228, 1, 0
    %v485 = vsel %vm229, 1, 0
    %v486 = vsel %vm230, 1, 0
    %v487 = vsel %vm231, 1, 0
    %v488 = vsel %vm232, 1, 0
    %v489 = vsel %vm233, 1, 0
    %v490 = vsel %vm234, 1, 0
    %v491 = vsel %vm235, 1, 0
    %v492 = vsel %vm236, 1, 0
    %v493 = vsel %vm237, 1, 0
    %v494 = vsel %vm238, 1, 0
    %v495 = vsel %vm239, 1, 0
    %v496 = vsel %vm240, 1, 0
    %v497 = vsel %vm241, 1, 0
    %v498 = vsel %vm242, 1, 0
    %v499 = vsel %vm243, 1, 0
    %v500 = vsel %vm244, 1, 0
    %v501 = vsel %vm245, 1, 0
    %v502 = vsel %vm246, 1, 0
    %v503 = vsel %vm247, 1, 0
    %v504 = vsel %vm248, 1, 0
    %v505 = vsel %vm249, 1, 0
    %v506 = vsel %vm250, 1, 0
    %v507 = vsel %vm251, 1, 0
    %v508 = vsel %vm252, 1, 0
    %v509 = vsel %vm253, 1, 0
    %v510 = vsel %vm254, 1, 0
    %v511 = vsel %vm255, 1, 0
    %v512 = vsel %vm256, 1, 0
    %v513 = vsel %vm257, 1, 0
    %v514 = vsel %vm258, 1, 0
    %v515 = vsel %vm259, 1, 0
    %v516 = vsel %vm260, 1, 0
    %v517 = vsel %vm261, 1, 0
    %v518 = vsel %vm262, 1, 0
    %v519 = vsel %vm263, 1, 0
    %v520 = vsel %vm264, 1, 0
    %v521 = vsel %vm265, 1, 0
    %v522 = vsel %vm266, 1, 0
    %v523 = vsel %vm267, 1, 0
    %v524 = vsel %vm268, 1, 0
    %v525 = vsel %vm269, 1, 0
    %v526 = vsel %vm270, 1, 0
    %v527 = vsel %vm271, 1, 0
    %v528 = vsel %vm272, 1, 0
    %v529 = vsel %vm273, 1, 0
    %v530 = vsel %vm274, 1, 0
    %v531 = vsel %vm275, 1, 0
    %v532 = vsel %vm276, 1, 0
    %v533 = vsel %vm277, 1, 0
    %v534 = vsel %vm278, 1, 0
    %v535 = vsel %vm279, 1, 0
    %v536 = vsel %vm280, 1, 0
    %v537 = vsel %vm281, 1, 0
    %v538 = vsel %vm282, 1, 0
    %v539 = vsel %vm283, 1, 0
    %v540 = vsel %vm284, 1, 0
    %v541 = vsel %vm285, 1, 0
    %v542 = vsel %vm286, 1, 0
    %v543 = vsel %vm287, 1, 0
    %v544 = vsel %vm288, 1, 0
    %v545 = vsel %vm289, 1, 0
    %v546 = vsel %vm290, 1, 0
    %v547 = vsel %vm291, 1, 0
    %v548 = vsel %vm292, 1, 0
    %v549 = vsel %vm293, 1, 0
    %v550 = vsel %vm294, 1, 0
    %v551 = vsel %vm295, 1, 0
    %v552 = vsel %vm296, 1, 0
    %v553 = vsel %vm297, 1, 0
    %v554 = vsel %vm298, 1, 0
    %v555 = vsel %vm299, 1, 0
    %v556 = vsel %vm300, 1, 0
    %v557 = vsel %vm301, 1, 0
    %v558 = vsel %vm302, 1, 0
    %v559 = vsel %vm303, 1, 0
    %v560 = vsel %vm304, 1, 0
    %v561 = vsel %vm305, 1, 0
    %v562 = vsel %vm306, 1, 0
    %v563 = vsel %vm307, 1, 0
    %v564 = vsel %vm308, 1, 0
    %v565 = vsel %vm309, 1, 0
    %v566 = vsel %vm310, 1, 0
    %v567 = vsel %vm311, 1, 0
    %v568 = vsel %vm312, 1, 0
    %v569 = vsel %vm313, 1, 0
    %v570 = vsel %vm314, 1, 0
    %v571 = vsel %vm315, 1, 0
    %v572 = vsel %vm316, 1, 0
    %v573 = vsel %vm317, 1, 0
    %v574 = vsel %vm318, 1, 0
    %v575 = vsel %vm319, 1, 0
    %v576 = vsel %vm320, 1, 0
    %v577 = vsel %vm321, 1, 0
    %v578 = vsel %vm322, 1, 0
    %v579 = vsel %vm323, 1, 0
    %v580 = vsel %vm324, 1, 0
    %v581 = vsel %vm325, 1, 0
    %v582 = vsel %vm326, 1, 0
    %v583 = vsel %vm327, 1, 0
    %v584 = vsel %vm328, 1, 0
    %v585 = vsel %vm329, 1, 0
    %v586 = vsel %vm330, 1, 0
    %v587 = vsel %vm331, 1, 0
    %v588 = vsel %vm332, 1, 0
    %v589 = vsel %vm333, 1, 0
    %v590 = vsel %vm334, 1, 0
    %v591 = vsel %vm335, 1, 0
    %v592 = vsel %vm336, 1, 0
    %v593 = vsel %vm337, 1, 0
    %v594 = vsel %vm338, 1, 0
    %v595 = vsel %vm339, 1, 0
    %v596 = vsel %vm340, 1, 0
    %v597 = vsel %vm341, 1, 0
    %v598 = vsel %vm342, 1, 0
    %v599 = vsel %vm343, 1, 0
    %v600 = vsel %vm344, 1, 0
    %v601 = vsel %vm345, 1, 0
    %v602 = vsel %vm346, 1, 0
    %v603 = vsel %vm347, 1, 0
    %v604 = vsel %vm348, 1, 0
    %v605 = vsel %vm349, 1, 0
    %v606 = vsel %vm350, 1, 0
    %v607 = vsel %vm351, 1, 0
    %v608 = vsel %vm352, 1, 0
    %v609 = vsel %vm353, 1, 0
    %v610 = vsel %vm354, 1, 0
    %v611 = vsel %vm355, 1, 0
    %v612 = vsel %vm356, 1, 0
    %v613 = vsel %vm357, 1, 0
    %v614 = vsel %vm358, 1, 0
    %v615 = vsel %vm359, 1, 0
    %v616 = vsel %vm360, 1, 0
    %v617 = vsel %vm361, 1, 0
    %v618 = vsel %vm362, 1, 0
    %v619 = vsel %vm363, 1, 0
    %v620 = vsel %vm364, 1, 0
    %v621 = vsel %vm365, 1, 0
    %v622 = vsel %vm366, 1, 0
    %v623 = vsel %vm367, 1, 0
    %v624 = vsel %vm368, 1, 0
    %v625 = vsel %vm369, 1, 0
    %v626 = vsel %vm370, 1, 0
    %v627 = vsel %vm371, 1, 0
    %v628 = vsel %vm372, 1, 0
    %v629 = vsel %vm373, 1, 0
    %v630 = vsel %vm374, 1, 0
    %v631 = vsel %vm375, 1, 0
    %v632 = vsel %vm376, 1, 0
    %v633 = vsel %vm377, 1, 0
    %v634 = vsel %vm378, 1, 0
    %v635 = vsel %vm379, 1, 0
    %v636 = vsel %vm380, 1, 0
    %v637 = vsel %vm381, 1, 0
    %v638 = vsel %vm382, 1, 0
    %v639 = vsel %vm383, 1, 0
    %v640 = vsel %vm384, 1, 0
    %v641 = vsel %vm385, 1, 0
    %v642 = vcvt.s32.f32 %v386
    %v643 = vcvt.s32.f32 %v387
    %v644 = vcvt.s32.f32 %v388
    %v645 = vcvt.s32.f32 %v389
    %v646 = vcvt.s32.f32 %v390
    %v647 = vcvt.s32.f32 %v391
    %v648 = vcvt.s32.f32 %v392
    %v649 = vcvt.s32.f32 %v393
    %v650 = vcvt.s32.f32 %v394
    %v651 = vcvt.s32.f32 %v395
    %v652 = vcvt.s32.f32 %v396
    %v653 = vcvt.s32.f32 %v397
    %v654 = vcvt.s32.f32 %v398
    %v655 = vcvt.s32.f32 %v399
    %v656 = vcvt.s32.f32 %v400
    %v657 = vcvt.s32.f32 %v401
    %v658 = vcvt.s32.f32 %v402
    %v659 = vcvt.s32.f32 %v403
    %v660 = vcvt.s32.f32 %v404
    %v661 = vcvt.s32.f32 %v405
    %v662 = vcvt.s32.f32 %v406
    %v663 = vcvt.s32.f32 %v407
    %v664 = vcvt.s32.f32 %v408
    %v665 = vcvt.s32.f32 %v409
    %v666 = vcvt.s32.f32 %v410
    %v667 = vcvt.s32.f32 %v411
    %v668 = vcvt.s32.f32 %v412
    %v669 = vcvt.s32.f32 %v413
    %v670 = vcvt.s32.f32 %v414
    %v671 = vcvt.s32.f32 %v415
    %v672 = vcvt.s32.f32 %v416
    %v673 = vcvt.s32.f32 %v417
    %v674 = vcvt.s32.f32 %v418
    %v675 = vcvt.s32.f32 %v419
    %v676 = vcvt.s32.f32 %v420
    %v677 = vcvt.s32.f32 %v421
    %v678 = vcvt.s32.f32 %v422
    %v679 = vcvt.s32.f32 %v423
    %v680 = vcvt.s32.f32 %v424
    %v681 = vcvt.s32.f32 %v425
    %v682 = vcvt.s32.f32 %v426
    %v683 = vcvt.s32.f32 %v427
    %v684 = vcvt.s32.f32 %v428
    %v685 = vcvt.s32.f32 %v429
    %v686 = vcvt.s32.f32 %v430
    %v687 = vcvt.s32.f32 %v431
    %v688 = vcvt.s32.f32 %v432
    %v689 = vcvt.s32.f32 %v433
    %v690 = vcvt.s32.f32 %v434
    %v691 = vcvt.s32.f32 %v435
    %v692 = vcvt.s32.f32 %v436
    %v693 = vcvt.s32.f32 %v437
    %v694 = vcvt.s32.f32 %v438
    %v695 = vcvt.s32.f32 %v439
    %v696 = vcvt.s32.f32 %v440
    %v697 = vcvt.s32.f32 %v441
    %v698 = vcvt.s32.f32 %v442
    %v699 = vcvt.s32.f32 %v443
    %v700 = vcvt.s32.f32 %v444
    %v701 = vcvt.s32.f32 %v445
    %v702 = vcvt.s32.f32 %v446
    %v703 = vcvt.s32.f32 %v447
    %v704 = vcvt.s32.f32 %v448
    %v705 = vcvt.s32.f32 %v449
    %v706 = vcvt.s32.f32 %v450
    %v707 = vcvt.s32.f32 %v451
    %v708 = vcvt.s32.f32 %v452
    %v709 = vcvt.s32.f32 %v453
    %v710 = vcvt.s32.f32 %v454
    %v711 = vcvt.s32.f32 %v455
    %v712 = vcvt.s32.f32 %v456
    %v713 = vcvt.s32.f32 %v457
    %v714 = vcvt.s32.f32 %v458
    %v715 = vcvt.s32.f32 %v459
    %v716 = vcvt.s32.f32 %v460
    %v717 = vcvt.s32.f32 %v461
    %v718 = vcvt.s32.f32 %v462
    %v719 = vcvt.s32.f32 %v463
    %v720 = vcvt.s32.f32 %v464
    %v721 = vcvt.s32.f32 %v465
    %v722 = vcvt.s32.f32 %v466
    %v723 = vcvt.s32.f32 %v467
    %v724 = vcvt.s32.f32 %v468
    %v725 = vcvt.s32.f32 %v469
    %v726 = vcvt.s32.f32 %v470
    %v727 = vcvt.s32.f32 %v471
    %v728 = vcvt.s32.f32 %v472
    %v729 = vcvt.s32.f32 %v473
    %v730 = vcvt.s32.f32 %v474
    %v731 = vcvt.s32.f32 %v475
    %v732 = vcvt.s32.f32 %v476
    %v733 = vcvt.s32.f32 %v477
    %v734 = vcvt.s32.f32 %v478
    %v735 = vcvt.s32.f32 %v479
    %v736 = vcvt.s32.f32 %v480
    %v737 = vcvt.s32.f32 %v481
    %v738 = vcvt.s32.f32 %v482
    %v739 = vcvt.s32.f32 %v483
    %v740 = vcvt.s32.f32 %v484
    %v741 = vcvt.s32.f32 %v485
    %v742 = vcvt.s32.f32 %v486
    %v743 = vcvt.s32.f32 %v487
    %v744 = vcvt.s32.f32 %v488
    %v745 = vcvt.s32.f32 %v489
    %v746 = vcvt.s32.f32 %v490
    %v747 = vcvt.s32.f32 %v491
    %v748 = vcvt.s32.f32 %v492
    %v749 = vcvt.s32.f32 %v493
    %v750 = vcvt.s32.f32 %v494
    %v751 = vcvt.s32.f32 %v495
    %v752 = vcvt.s32.f32 %v496
    %v753 = vcvt.s32.f32 %v497
    %v754 = vcvt.s32.f32 %v498
    %v755 = vcvt.s32.f32 %v499
    %v756 = vcvt.s32.f32 %v500
    %v757 = vcvt.s32.f32 %v501
    %v758 = vcvt.s32.f32 %v502
    %v759 = vcvt.s32.f32 %v503
    %v760 = vcvt.s32.f32 %v504
    %v761 = vcvt.s32.f32 %v505
    %v762 = vcvt.s32.f32 %v506
    %v763 = vcvt.s32.f32 %v507
    %v764 = vcvt.s32.f32 %v508
    %v765 = vcvt.s32.f32 %v509
    %v766 = vcvt.s32.f32 %v510
    %v767 = vcvt.s32.f32 %v511
    %v768 = vcvt.s32.f32 %v512
    %v769 = vcvt.s32.f32 %v513
    %v770 = vcvt.s32.f32 %v514
    %v771 = vcvt.s32.f32 %v515
    %v772 = vcvt.s32.f32 %v516
    %v773 = vcvt.s32.f32 %v517
    %v774 = vcvt.s32.f32 %v518
    %v775 = vcvt.s32.f32 %v519
    %v776 = vcvt.s32.f32 %v520
    %v777 = vcvt.s32.f32 %v521
    %v778 = vcvt.s32.f32 %v522
    %v779 = vcvt.s32.f32 %v523
    %v780 = vcvt.s32.f32 %v524
    %v781 = vcvt.s32.f32 %v525
    %v782 = vcvt.s32.f32 %v526
    %v783 = vcvt.s32.f32 %v527
    %v784 = vcvt.s32.f32 %v528
    %v785 = vcvt.s32.f32 %v529
    %v786 = vcvt.s32.f32 %v530
    %v787 = vcvt.s32.f32 %v531
    %v788 = vcvt.s32.f32 %v532
    %v789 = vcvt.s32.f32 %v533
    %v790 = vcvt.s32.f32 %v534
    %v791 = vcvt.s32.f32 %v535
    %v792 = vcvt.s32.f32 %v536
    %v793 = vcvt.s32.f32 %v537
    %v794 = vcvt.s32.f32 %v538
    %v795 = vcvt.s32.f32 %v539
    %v796 = vcvt.s32.f32 %v540
    %v797 = vcvt.s32.f32 %v541
    %v798 = vcvt.s32.f32 %v542
    %v799 = vcvt.s32.f32 %v543
    %v800 = vcvt.s32.f32 %v544
    %v801 = vcvt.s32.f32 %v545
    %v802 = vcvt.s32.f32 %v546
    %v803 = vcvt.s32.f32 %v547
    %v804 = vcvt.s32.f32 %v548
    %v805 = vcvt.s32.f32 %v549
    %v806 = vcvt.s32.f32 %v550
    %v807 = vcvt.s32.f32 %v551
    %v808 = vcvt.s32.f32 %v552
    %v809 = vcvt.s32.f32 %v553
    %v810 = vcvt.s32.f32 %v554
    %v811 = vcvt.s32.f32 %v555
    %v812 = vcvt.s32.f32 %v556
    %v813 = vcvt.s32.f32 %v557
    %v814 = vcvt.s32.f32 %v558
    %v815 = vcvt.s32.f32 %v559
    %v816 = vcvt.s32.f32 %v560
    %v817 = vcvt.s32.f32 %v561
    %v818 = vcvt.s32.f32 %v562
    %v819 = vcvt.s32.f32 %v563
    %v820 = vcvt.s32.f32 %v564
    %v821 = vcvt.s32.f32 %v565
    %v822 = vcvt.s32.f32 %v566
    %v823 = vcvt.s32.f32 %v567
    %v824 = vcvt.s32.f32 %v568
    %v825 = vcvt.s32.f32 %v569
    %v826 = vcvt.s32.f32 %v570
    %v827 = vcvt.s32.f32 %v571
    %v828 = vcvt.s32.f32 %v572
    %v829 = vcvt.s32.f32 %v573
    %v830 = vcvt.s32.f32 %v574
    %v831 = vcvt.s32.f32 %v575
    %v832 = vcvt.s32.f32 %v576
    %v833 = vcvt.s32.f32 %v577
    %v834 = vcvt.s32.f32 %v578
    %v835 = vcvt.s32.f32 %v579
    %v836 = vcvt.s32.f32 %v580
    %v837 = vcvt.s32.f32 %v581
    %v838 = vcvt.s32.f32 %v582
    %v839 = vcvt.s32.f32 %v583
    %v840 = vcvt.s32.f32 %v584
    %v841 = vcvt.s32.f32 %v585
    %v842 = vcvt.s32.f32 %v586
    %v843 = vcvt.s32.f32 %v587
    %v844 = vcvt.s32.f32 %v588
    %v845 = vcvt.s32.f32 %v589
    %v846 = vcvt.s32.f32 %v590
    %v847 = vcvt.s32.f32 %v591
    %v848 = vcvt.s32.f32 %v592
    %v849 = vcvt.s32.f32 %v593
    %v850 = vcvt.s32.f32 %v594
    %v851 = vcvt.s32.f32 %v595
    %v852 = vcvt.s32.f32 %v596
    %v853 = vcvt.s32.f32 %v597
    %v854 = vcvt.s32.f32 %v598
    %v855 = vcvt.s32.f32 %v599
    %v856 = vcvt.s32.f32 %v600
    %v857 = vcvt.s32.f32 %v601
    %v858 = vcvt.s32.f32 %v602
    %v859 = vcvt.s32.f32 %v603
    %v860 = vcvt.s32.f32 %v604
    %v861 = vcvt.s32.f32 %v605
    %v862 = vcvt.s32.f32 %v606
    %v863 = vcvt.s32.f32 %v607
    %v864 = vcvt.s32.f32 %v608
    %v865 = vcvt.s32.f32 %v609
    %v866 = vcvt.s32.f32 %v610
    %v867 = vcvt.s32.f32 %v611
    %v868 = vcvt.s32.f32 %v612
    %v869 = vcvt.s32.f32 %v613
    %v870 = vcvt.s32.f32 %v614
    %v871 = vcvt.s32.f32 %v615
    %v872 = vcvt.s32.f32 %v616
    %v873 = vcvt.s32.f32 %v617
    %v874 = vcvt.s32.f32 %v618
    %v875 = vcvt.s32.f32 %v619
    %v876 = vcvt.s32.f32 %v620
    %v877 = vcvt.s32.f32 %v621
    %v878 = vcvt.s32.f32 %v622
    %v879 = vcvt.s32.f32 %v623
    %v880 = vcvt.s32.f32 %v624
    %v881 = vcvt.s32.f32 %v625
    %v882 = vcvt.s32.f32 %v626
    %v883 = vcvt.s32.f32 %v627
    %v884 = vcvt.s32.f32 %v628
    %v885 = vcvt.s32.f32 %v629
    %v886 = vcvt.s32.f32 %v630
    %v887 = vcvt.s32.f32 %v631
    %v888 = vcvt.s32.f32 %v632
    %v889 = vcvt.s32.f32 %v633
    %v890 = vcvt.s32.f32 %v634
    %v891 = vcvt.s32.f32 %v635
    %v892 = vcvt.s32.f32 %v636
    %v893 = vcvt.s32.f32 %v637
    %v894 = vcvt.s32.f32 %v638
    %v895 = vcvt.s32.f32 %v639
    %v896 = vcvt.s32.f32 %v640
    %v897 = vcvt.s32.f32 %v641
    %v898 = vpack.c.bf16 %v658, %v642
    %v899 = vpack.c.bf16 %v659, %v643
    %v900 = vpack.c.bf16 %v660, %v644
    %v901 = vpack.c.bf16 %v661, %v645
    %v902 = vpack.c.bf16 %v662, %v646
    %v903 = vpack.c.bf16 %v663, %v647
    %v904 = vpack.c.bf16 %v664, %v648
    %v905 = vpack.c.bf16 %v665, %v649
    %v906 = vpack.c.bf16 %v666, %v650
    %v907 = vpack.c.bf16 %v667, %v651
    %v908 = vpack.c.bf16 %v668, %v652
    %v909 = vpack.c.bf16 %v669, %v653
    %v910 = vpack.c.bf16 %v670, %v654
    %v911 = vpack.c.bf16 %v671, %v655
    %v912 = vpack.c.bf16 %v672, %v656
    %v913 = vpack.c.bf16 %v673, %v657
    %v914 = vpack.c.bf16 %v690, %v674
    %v915 = vpack.c.bf16 %v691, %v675
    %v916 = vpack.c.bf16 %v692, %v676
    %v917 = vpack.c.bf16 %v693, %v677
    %v918 = vpack.c.bf16 %v694, %v678
    %v919 = vpack.c.bf16 %v695, %v679
    %v920 = vpack.c.bf16 %v696, %v680
    %v921 = vpack.c.bf16 %v697, %v681
    %v922 = vpack.c.bf16 %v698, %v682
    %v923 = vpack.c.bf16 %v699, %v683
    %v924 = vpack.c.bf16 %v700, %v684
    %v925 = vpack.c.bf16 %v701, %v685
    %v926 = vpack.c.bf16 %v702, %v686
    %v927 = vpack.c.bf16 %v703, %v687
    %v928 = vpack.c.bf16 %v704, %v688
    %v929 = vpack.c.bf16 %v705, %v689
    %v930 = vpack.c.bf16 %v722, %v706
    %v931 = vpack.c.bf16 %v723, %v707
    %v932 = vpack.c.bf16 %v724, %v708
    %v933 = vpack.c.bf16 %v725, %v709
    %v934 = vpack.c.bf16 %v726, %v710
    %v935 = vpack.c.bf16 %v727, %v711
    %v936 = vpack.c.bf16 %v728, %v712
    %v937 = vpack.c.bf16 %v729, %v713
    %v938 = vpack.c.bf16 %v730, %v714
    %v939 = vpack.c.bf16 %v731, %v715
    %v940 = vpack.c.bf16 %v732, %v716
    %v941 = vpack.c.bf16 %v733, %v717
    %v942 = vpack.c.bf16 %v734, %v718
    %v943 = vpack.c.bf16 %v735, %v719
    %v944 = vpack.c.bf16 %v736, %v720
    %v945 = vpack.c.bf16 %v737, %v721
    %v946 = vpack.c.bf16 %v754, %v738
    %v947 = vpack.c.bf16 %v755, %v739
    %v948 = vpack.c.bf16 %v756, %v740
    %v949 = vpack.c.bf16 %v757, %v741
    %v950 = vpack.c.bf16 %v758, %v742
    %v951 = vpack.c.bf16 %v759, %v743
    %v952 = vpack.c.bf16 %v760, %v744
    %v953 = vpack.c.bf16 %v761, %v745
    %v954 = vpack.c.bf16 %v762, %v746
    %v955 = vpack.c.bf16 %v763, %v747
    %v956 = vpack.c.bf16 %v764, %v748
    %v957 = vpack.c.bf16 %v765, %v749
    %v958 = vpack.c.bf16 %v766, %v750
    %v959 = vpack.c.bf16 %v767, %v751
    %v960 = vpack.c.bf16 %v768, %v752
    %v961 = vpack.c.bf16 %v769, %v753
    %v962 = vpack.c.bf16 %v786, %v770
    %v963 = vpack.c.bf16 %v787, %v771
    %v964 = vpack.c.bf16 %v788, %v772
    %v965 = vpack.c.bf16 %v789, %v773
    %v966 = vpack.c.bf16 %v790, %v774
    %v967 = vpack.c.bf16 %v791, %v775
    %v968 = vpack.c.bf16 %v792, %v776
    %v969 = vpack.c.bf16 %v793, %v777
    %v970 = vpack.c.bf16 %v794, %v778
    %v971 = vpack.c.bf16 %v795, %v779
    %v972 = vpack.c.bf16 %v796, %v780
    %v973 = vpack.c.bf16 %v797, %v781
    %v974 = vpack.c.bf16 %v798, %v782
    %v975 = vpack.c.bf16 %v799, %v783
    %v976 = vpack.c.bf16 %v800, %v784
    %v977 = vpack.c.bf16 %v801, %v785
    %v978 = vpack.c.bf16 %v818, %v802
    %v979 = vpack.c.bf16 %v819, %v803
    %v980 = vpack.c.bf16 %v820, %v804
    %v981 = vpack.c.bf16 %v821, %v805
    %v982 = vpack.c.bf16 %v822, %v806
    %v983 = vpack.c.bf16 %v823, %v807
    %v984 = vpack.c.bf16 %v824, %v808
    %v985 = vpack.c.bf16 %v825, %v809
    %v986 = vpack.c.bf16 %v826, %v810
    %v987 = vpack.c.bf16 %v827, %v811
    %v988 = vpack.c.bf16 %v828, %v812
    %v989 = vpack.c.bf16 %v829, %v813
    %v990 = vpack.c.bf16 %v830, %v814
    %v991 = vpack.c.bf16 %v831, %v815
    %v992 = vpack.c.bf16 %v832, %v816
    %v993 = vpack.c.bf16 %v833, %v817
    %v994 = vpack.c.bf16 %v850, %v834
    %v995 = vpack.c.bf16 %v851, %v835
    %v996 = vpack.c.bf16 %v852, %v836
    %v997 = vpack.c.bf16 %v853, %v837
    %v998 = vpack.c.bf16 %v854, %v838
    %v999 = vpack.c.bf16 %v855, %v839
    %v1000 = vpack.c.bf16 %v856, %v840
    %v1001 = vpack.c.bf16 %v857, %v841
    %v1002 = vpack.c.bf16 %v858, %v842
    %v1003 = vpack.c.bf16 %v859, %v843
    %v1004 = vpack.c.bf16 %v860, %v844
    %v1005 = vpack.c.bf16 %v861, %v845
    %v1006 = vpack.c.bf16 %v862, %v846
    %v1007 = vpack.c.bf16 %v863, %v847
    %v1008 = vpack.c.bf16 %v864, %v848
    %v1009 = vpack.c.bf16 %v865, %v849
    %v1010 = vpack.c.bf16 %v882, %v866
    %v1011 = vpack.c.bf16 %v883, %v867
    %v1012 = vpack.c.bf16 %v884, %v868
    %v1013 = vpack.c.bf16 %v885, %v869
    %v1014 = vpack.c.bf16 %v886, %v870
    %v1015 = vpack.c.bf16 %v887, %v871
    %v1016 = vpack.c.bf16 %v888, %v872
    %v1017 = vpack.c.bf16 %v889, %v873
    %v1018 = vpack.c.bf16 %v890, %v874
    %v1019 = vpack.c.bf16 %v891, %v875
    %v1020 = vpack.c.bf16 %v892, %v876
    %v1021 = vpack.c.bf16 %v893, %v877
    %v1022 = vpack.c.bf16 %v894, %v878
    %v1023 = vpack.c.bf16 %v895, %v879
    %v1024 = vpack.c.bf16 %v896, %v880
    %v1025 = vpack.c.bf16 %v897, %v881
    %v1026 = vlaneseq
    %v1027 = vshrl.u32 %v1026, 7
    %v1028 = vsub.s32 0, %v1027
    %v1029 = vrot.slane %v46, %v1028
    %v1030 = vlaneseq
    %v1031 = vshrl.u32 %v1030, 7
    %v1032 = vsub.s32 1, %v1031
    %v1033 = vrot.slane %v46, %v1032
    %v1034 = vlaneseq
    %v1035 = vshrl.u32 %v1034, 7
    %v1036 = vsub.s32 2, %v1035
    %v1037 = vrot.slane %v46, %v1036
    %v1038 = vlaneseq
    %v1039 = vshrl.u32 %v1038, 7
    %v1040 = vsub.s32 3, %v1039
    %v1041 = vrot.slane %v46, %v1040
    %v1042 = vlaneseq
    %v1043 = vshrl.u32 %v1042, 7
    %v1044 = vsub.s32 4, %v1043
    %v1045 = vrot.slane %v46, %v1044
    %v1046 = vlaneseq
    %v1047 = vshrl.u32 %v1046, 7
    %v1048 = vsub.s32 5, %v1047
    %v1049 = vrot.slane %v46, %v1048
    %v1050 = vlaneseq
    %v1051 = vshrl.u32 %v1050, 7
    %v1052 = vsub.s32 6, %v1051
    %v1053 = vrot.slane %v46, %v1052
    %v1054 = vlaneseq
    %v1055 = vshrl.u32 %v1054, 7
    %v1056 = vsub.s32 7, %v1055
    %v1057 = vrot.slane %v46, %v1056
    %v1058 = vlaneseq
    %v1059 = vshrl.u32 %v1058, 7
    %v1060 = vsub.s32 0, %v1059
    %v1061 = vrot.slane %v48, %v1060
    %v1062 = vlaneseq
    %v1063 = vshrl.u32 %v1062, 7
    %v1064 = vsub.s32 1, %v1063
    %v1065 = vrot.slane %v48, %v1064
    %v1066 = vlaneseq
    %v1067 = vshrl.u32 %v1066, 7
    %v1068 = vsub.s32 2, %v1067
    %v1069 = vrot.slane %v48, %v1068
    %v1070 = vlaneseq
    %v1071 = vshrl.u32 %v1070, 7
    %v1072 = vsub.s32 3, %v1071
    %v1073 = vrot.slane %v48, %v1072
    %v1074 = vlaneseq
    %v1075 = vshrl.u32 %v1074, 7
    %v1076 = vsub.s32 4, %v1075
    %v1077 = vrot.slane %v48, %v1076
    %v1078 = vlaneseq
    %v1079 = vshrl.u32 %v1078, 7
    %v1080 = vsub.s32 5, %v1079
    %v1081 = vrot.slane %v48, %v1080
    %v1082 = vlaneseq
    %v1083 = vshrl.u32 %v1082, 7
    %v1084 = vsub.s32 6, %v1083
    %v1085 = vrot.slane %v48, %v1084
    %v1086 = vlaneseq
    %v1087 = vshrl.u32 %v1086, 7
    %v1088 = vsub.s32 7, %v1087
    %v1089 = vrot.slane %v48, %v1088
    %vm1090 = vcmp.eq.s32.totalorder %v50, %v1029
    %vm1091 = vcmp.eq.s32.totalorder %v50, %v1033
    %vm1092 = vcmp.eq.s32.totalorder %v50, %v1037
    %vm1093 = vcmp.eq.s32.totalorder %v50, %v1041
    %vm1094 = vcmp.eq.s32.totalorder %v50, %v1045
    %vm1095 = vcmp.eq.s32.totalorder %v50, %v1049
    %vm1096 = vcmp.eq.s32.totalorder %v50, %v1053
    %vm1097 = vcmp.eq.s32.totalorder %v50, %v1057
    %vm1098 = vcmp.eq.s32.totalorder %v50, %v1061
    %vm1099 = vcmp.eq.s32.totalorder %v50, %v1065
    %vm1100 = vcmp.eq.s32.totalorder %v50, %v1069
    %vm1101 = vcmp.eq.s32.totalorder %v50, %v1073
    %vm1102 = vcmp.eq.s32.totalorder %v50, %v1077
    %vm1103 = vcmp.eq.s32.totalorder %v50, %v1081
    %vm1104 = vcmp.eq.s32.totalorder %v50, %v1085
    %vm1105 = vcmp.eq.s32.totalorder %v50, %v1089
    %vm1106 = vcmp.eq.s32.totalorder %v51, %v1029
    %vm1107 = vcmp.eq.s32.totalorder %v51, %v1033
    %vm1108 = vcmp.eq.s32.totalorder %v51, %v1037
    %vm1109 = vcmp.eq.s32.totalorder %v51, %v1041
    %vm1110 = vcmp.eq.s32.totalorder %v51, %v1045
    %vm1111 = vcmp.eq.s32.totalorder %v51, %v1049
    %vm1112 = vcmp.eq.s32.totalorder %v51, %v1053
    %vm1113 = vcmp.eq.s32.totalorder %v51, %v1057
    %vm1114 = vcmp.eq.s32.totalorder %v51, %v1061
    %vm1115 = vcmp.eq.s32.totalorder %v51, %v1065
    %vm1116 = vcmp.eq.s32.totalorder %v51, %v1069
    %vm1117 = vcmp.eq.s32.totalorder %v51, %v1073
    %vm1118 = vcmp.eq.s32.totalorder %v51, %v1077
    %vm1119 = vcmp.eq.s32.totalorder %v51, %v1081
    %vm1120 = vcmp.eq.s32.totalorder %v51, %v1085
    %vm1121 = vcmp.eq.s32.totalorder %v51, %v1089
    %vm1122 = vcmp.eq.s32.totalorder %v52, %v1029
    %vm1123 = vcmp.eq.s32.totalorder %v52, %v1033
    %vm1124 = vcmp.eq.s32.totalorder %v52, %v1037
    %vm1125 = vcmp.eq.s32.totalorder %v52, %v1041
    %vm1126 = vcmp.eq.s32.totalorder %v52, %v1045
    %vm1127 = vcmp.eq.s32.totalorder %v52, %v1049
    %vm1128 = vcmp.eq.s32.totalorder %v52, %v1053
    %vm1129 = vcmp.eq.s32.totalorder %v52, %v1057
    %vm1130 = vcmp.eq.s32.totalorder %v52, %v1061
    %vm1131 = vcmp.eq.s32.totalorder %v52, %v1065
    %vm1132 = vcmp.eq.s32.totalorder %v52, %v1069
    %vm1133 = vcmp.eq.s32.totalorder %v52, %v1073
    %vm1134 = vcmp.eq.s32.totalorder %v52, %v1077
    %vm1135 = vcmp.eq.s32.totalorder %v52, %v1081
    %vm1136 = vcmp.eq.s32.totalorder %v52, %v1085
    %vm1137 = vcmp.eq.s32.totalorder %v52, %v1089
    %vm1138 = vcmp.eq.s32.totalorder %v53, %v1029
    %vm1139 = vcmp.eq.s32.totalorder %v53, %v1033
    %vm1140 = vcmp.eq.s32.totalorder %v53, %v1037
    %vm1141 = vcmp.eq.s32.totalorder %v53, %v1041
    %vm1142 = vcmp.eq.s32.totalorder %v53, %v1045
    %vm1143 = vcmp.eq.s32.totalorder %v53, %v1049
    %vm1144 = vcmp.eq.s32.totalorder %v53, %v1053
    %vm1145 = vcmp.eq.s32.totalorder %v53, %v1057
    %vm1146 = vcmp.eq.s32.totalorder %v53, %v1061
    %vm1147 = vcmp.eq.s32.totalorder %v53, %v1065
    %vm1148 = vcmp.eq.s32.totalorder %v53, %v1069
    %vm1149 = vcmp.eq.s32.totalorder %v53, %v1073
    %vm1150 = vcmp.eq.s32.totalorder %v53, %v1077
    %vm1151 = vcmp.eq.s32.totalorder %v53, %v1081
    %vm1152 = vcmp.eq.s32.totalorder %v53, %v1085
    %vm1153 = vcmp.eq.s32.totalorder %v53, %v1089
    %vm1154 = vcmp.eq.s32.totalorder %v54, %v1029
    %vm1155 = vcmp.eq.s32.totalorder %v54, %v1033
    %vm1156 = vcmp.eq.s32.totalorder %v54, %v1037
    %vm1157 = vcmp.eq.s32.totalorder %v54, %v1041
    %vm1158 = vcmp.eq.s32.totalorder %v54, %v1045
    %vm1159 = vcmp.eq.s32.totalorder %v54, %v1049
    %vm1160 = vcmp.eq.s32.totalorder %v54, %v1053
    %vm1161 = vcmp.eq.s32.totalorder %v54, %v1057
    %vm1162 = vcmp.eq.s32.totalorder %v54, %v1061
    %vm1163 = vcmp.eq.s32.totalorder %v54, %v1065
    %vm1164 = vcmp.eq.s32.totalorder %v54, %v1069
    %vm1165 = vcmp.eq.s32.totalorder %v54, %v1073
    %vm1166 = vcmp.eq.s32.totalorder %v54, %v1077
    %vm1167 = vcmp.eq.s32.totalorder %v54, %v1081
    %vm1168 = vcmp.eq.s32.totalorder %v54, %v1085
    %vm1169 = vcmp.eq.s32.totalorder %v54, %v1089
    %vm1170 = vcmp.eq.s32.totalorder %v55, %v1029
    %vm1171 = vcmp.eq.s32.totalorder %v55, %v1033
    %vm1172 = vcmp.eq.s32.totalorder %v55, %v1037
    %vm1173 = vcmp.eq.s32.totalorder %v55, %v1041
    %vm1174 = vcmp.eq.s32.totalorder %v55, %v1045
    %vm1175 = vcmp.eq.s32.totalorder %v55, %v1049
    %vm1176 = vcmp.eq.s32.totalorder %v55, %v1053
    %vm1177 = vcmp.eq.s32.totalorder %v55, %v1057
    %vm1178 = vcmp.eq.s32.totalorder %v55, %v1061
    %vm1179 = vcmp.eq.s32.totalorder %v55, %v1065
    %vm1180 = vcmp.eq.s32.totalorder %v55, %v1069
    %vm1181 = vcmp.eq.s32.totalorder %v55, %v1073
    %vm1182 = vcmp.eq.s32.totalorder %v55, %v1077
    %vm1183 = vcmp.eq.s32.totalorder %v55, %v1081
    %vm1184 = vcmp.eq.s32.totalorder %v55, %v1085
    %vm1185 = vcmp.eq.s32.totalorder %v55, %v1089
    %vm1186 = vcmp.eq.s32.totalorder %v56, %v1029
    %vm1187 = vcmp.eq.s32.totalorder %v56, %v1033
    %vm1188 = vcmp.eq.s32.totalorder %v56, %v1037
    %vm1189 = vcmp.eq.s32.totalorder %v56, %v1041
    %vm1190 = vcmp.eq.s32.totalorder %v56, %v1045
    %vm1191 = vcmp.eq.s32.totalorder %v56, %v1049
    %vm1192 = vcmp.eq.s32.totalorder %v56, %v1053
    %vm1193 = vcmp.eq.s32.totalorder %v56, %v1057
    %vm1194 = vcmp.eq.s32.totalorder %v56, %v1061
    %vm1195 = vcmp.eq.s32.totalorder %v56, %v1065
    %vm1196 = vcmp.eq.s32.totalorder %v56, %v1069
    %vm1197 = vcmp.eq.s32.totalorder %v56, %v1073
    %vm1198 = vcmp.eq.s32.totalorder %v56, %v1077
    %vm1199 = vcmp.eq.s32.totalorder %v56, %v1081
    %vm1200 = vcmp.eq.s32.totalorder %v56, %v1085
    %vm1201 = vcmp.eq.s32.totalorder %v56, %v1089
    %vm1202 = vcmp.eq.s32.totalorder %v57, %v1029
    %vm1203 = vcmp.eq.s32.totalorder %v57, %v1033
    %vm1204 = vcmp.eq.s32.totalorder %v57, %v1037
    %vm1205 = vcmp.eq.s32.totalorder %v57, %v1041
    %vm1206 = vcmp.eq.s32.totalorder %v57, %v1045
    %vm1207 = vcmp.eq.s32.totalorder %v57, %v1049
    %vm1208 = vcmp.eq.s32.totalorder %v57, %v1053
    %vm1209 = vcmp.eq.s32.totalorder %v57, %v1057
    %vm1210 = vcmp.eq.s32.totalorder %v57, %v1061
    %vm1211 = vcmp.eq.s32.totalorder %v57, %v1065
    %vm1212 = vcmp.eq.s32.totalorder %v57, %v1069
    %vm1213 = vcmp.eq.s32.totalorder %v57, %v1073
    %vm1214 = vcmp.eq.s32.totalorder %v57, %v1077
    %vm1215 = vcmp.eq.s32.totalorder %v57, %v1081
    %vm1216 = vcmp.eq.s32.totalorder %v57, %v1085
    %vm1217 = vcmp.eq.s32.totalorder %v57, %v1089
    %vm1218 = vcmp.eq.s32.totalorder %v58, %v1029
    %vm1219 = vcmp.eq.s32.totalorder %v58, %v1033
    %vm1220 = vcmp.eq.s32.totalorder %v58, %v1037
    %vm1221 = vcmp.eq.s32.totalorder %v58, %v1041
    %vm1222 = vcmp.eq.s32.totalorder %v58, %v1045
    %vm1223 = vcmp.eq.s32.totalorder %v58, %v1049
    %vm1224 = vcmp.eq.s32.totalorder %v58, %v1053
    %vm1225 = vcmp.eq.s32.totalorder %v58, %v1057
    %vm1226 = vcmp.eq.s32.totalorder %v58, %v1061
    %vm1227 = vcmp.eq.s32.totalorder %v58, %v1065
    %vm1228 = vcmp.eq.s32.totalorder %v58, %v1069
    %vm1229 = vcmp.eq.s32.totalorder %v58, %v1073
    %vm1230 = vcmp.eq.s32.totalorder %v58, %v1077
    %vm1231 = vcmp.eq.s32.totalorder %v58, %v1081
    %vm1232 = vcmp.eq.s32.totalorder %v58, %v1085
    %vm1233 = vcmp.eq.s32.totalorder %v58, %v1089
    %vm1234 = vcmp.eq.s32.totalorder %v59, %v1029
    %vm1235 = vcmp.eq.s32.totalorder %v59, %v1033
    %vm1236 = vcmp.eq.s32.totalorder %v59, %v1037
    %vm1237 = vcmp.eq.s32.totalorder %v59, %v1041
    %vm1238 = vcmp.eq.s32.totalorder %v59, %v1045
    %vm1239 = vcmp.eq.s32.totalorder %v59, %v1049
    %vm1240 = vcmp.eq.s32.totalorder %v59, %v1053
    %vm1241 = vcmp.eq.s32.totalorder %v59, %v1057
    %vm1242 = vcmp.eq.s32.totalorder %v59, %v1061
    %vm1243 = vcmp.eq.s32.totalorder %v59, %v1065
    %vm1244 = vcmp.eq.s32.totalorder %v59, %v1069
    %vm1245 = vcmp.eq.s32.totalorder %v59, %v1073
    %vm1246 = vcmp.eq.s32.totalorder %v59, %v1077
    %vm1247 = vcmp.eq.s32.totalorder %v59, %v1081
    %vm1248 = vcmp.eq.s32.totalorder %v59, %v1085
    %vm1249 = vcmp.eq.s32.totalorder %v59, %v1089
    %vm1250 = vcmp.eq.s32.totalorder %v60, %v1029
    %vm1251 = vcmp.eq.s32.totalorder %v60, %v1033
    %vm1252 = vcmp.eq.s32.totalorder %v60, %v1037
    %vm1253 = vcmp.eq.s32.totalorder %v60, %v1041
    %vm1254 = vcmp.eq.s32.totalorder %v60, %v1045
    %vm1255 = vcmp.eq.s32.totalorder %v60, %v1049
    %vm1256 = vcmp.eq.s32.totalorder %v60, %v1053
    %vm1257 = vcmp.eq.s32.totalorder %v60, %v1057
    %vm1258 = vcmp.eq.s32.totalorder %v60, %v1061
    %vm1259 = vcmp.eq.s32.totalorder %v60, %v1065
    %vm1260 = vcmp.eq.s32.totalorder %v60, %v1069
    %vm1261 = vcmp.eq.s32.totalorder %v60, %v1073
    %vm1262 = vcmp.eq.s32.totalorder %v60, %v1077
    %vm1263 = vcmp.eq.s32.totalorder %v60, %v1081
    %vm1264 = vcmp.eq.s32.totalorder %v60, %v1085
    %vm1265 = vcmp.eq.s32.totalorder %v60, %v1089
    %vm1266 = vcmp.eq.s32.totalorder %v61, %v1029
    %vm1267 = vcmp.eq.s32.totalorder %v61, %v1033
    %vm1268 = vcmp.eq.s32.totalorder %v61, %v1037
    %vm1269 = vcmp.eq.s32.totalorder %v61, %v1041
    %vm1270 = vcmp.eq.s32.totalorder %v61, %v1045
    %vm1271 = vcmp.eq.s32.totalorder %v61, %v1049
    %vm1272 = vcmp.eq.s32.totalorder %v61, %v1053
    %vm1273 = vcmp.eq.s32.totalorder %v61, %v1057
    %vm1274 = vcmp.eq.s32.totalorder %v61, %v1061
    %vm1275 = vcmp.eq.s32.totalorder %v61, %v1065
    %vm1276 = vcmp.eq.s32.totalorder %v61, %v1069
    %vm1277 = vcmp.eq.s32.totalorder %v61, %v1073
    %vm1278 = vcmp.eq.s32.totalorder %v61, %v1077
    %vm1279 = vcmp.eq.s32.totalorder %v61, %v1081
    %vm1280 = vcmp.eq.s32.totalorder %v61, %v1085
    %vm1281 = vcmp.eq.s32.totalorder %v61, %v1089
    %vm1282 = vcmp.eq.s32.totalorder %v62, %v1029
    %vm1283 = vcmp.eq.s32.totalorder %v62, %v1033
    %vm1284 = vcmp.eq.s32.totalorder %v62, %v1037
    %vm1285 = vcmp.eq.s32.totalorder %v62, %v1041
    %vm1286 = vcmp.eq.s32.totalorder %v62, %v1045
    %vm1287 = vcmp.eq.s32.totalorder %v62, %v1049
    %vm1288 = vcmp.eq.s32.totalorder %v62, %v1053
    %vm1289 = vcmp.eq.s32.totalorder %v62, %v1057
    %vm1290 = vcmp.eq.s32.totalorder %v62, %v1061
    %vm1291 = vcmp.eq.s32.totalorder %v62, %v1065
    %vm1292 = vcmp.eq.s32.totalorder %v62, %v1069
    %vm1293 = vcmp.eq.s32.totalorder %v62, %v1073
    %vm1294 = vcmp.eq.s32.totalorder %v62, %v1077
    %vm1295 = vcmp.eq.s32.totalorder %v62, %v1081
    %vm1296 = vcmp.eq.s32.totalorder %v62, %v1085
    %vm1297 = vcmp.eq.s32.totalorder %v62, %v1089
    %vm1298 = vcmp.eq.s32.totalorder %v63, %v1029
    %vm1299 = vcmp.eq.s32.totalorder %v63, %v1033
    %vm1300 = vcmp.eq.s32.totalorder %v63, %v1037
    %vm1301 = vcmp.eq.s32.totalorder %v63, %v1041
    %vm1302 = vcmp.eq.s32.totalorder %v63, %v1045
    %vm1303 = vcmp.eq.s32.totalorder %v63, %v1049
    %vm1304 = vcmp.eq.s32.totalorder %v63, %v1053
    %vm1305 = vcmp.eq.s32.totalorder %v63, %v1057
    %vm1306 = vcmp.eq.s32.totalorder %v63, %v1061
    %vm1307 = vcmp.eq.s32.totalorder %v63, %v1065
    %vm1308 = vcmp.eq.s32.totalorder %v63, %v1069
    %vm1309 = vcmp.eq.s32.totalorder %v63, %v1073
    %vm1310 = vcmp.eq.s32.totalorder %v63, %v1077
    %vm1311 = vcmp.eq.s32.totalorder %v63, %v1081
    %vm1312 = vcmp.eq.s32.totalorder %v63, %v1085
    %vm1313 = vcmp.eq.s32.totalorder %v63, %v1089
    %vm1314 = vcmp.eq.s32.totalorder %v64, %v1029
    %vm1315 = vcmp.eq.s32.totalorder %v64, %v1033
    %vm1316 = vcmp.eq.s32.totalorder %v64, %v1037
    %vm1317 = vcmp.eq.s32.totalorder %v64, %v1041
    %vm1318 = vcmp.eq.s32.totalorder %v64, %v1045
    %vm1319 = vcmp.eq.s32.totalorder %v64, %v1049
    %vm1320 = vcmp.eq.s32.totalorder %v64, %v1053
    %vm1321 = vcmp.eq.s32.totalorder %v64, %v1057
    %vm1322 = vcmp.eq.s32.totalorder %v64, %v1061
    %vm1323 = vcmp.eq.s32.totalorder %v64, %v1065
    %vm1324 = vcmp.eq.s32.totalorder %v64, %v1069
    %vm1325 = vcmp.eq.s32.totalorder %v64, %v1073
    %vm1326 = vcmp.eq.s32.totalorder %v64, %v1077
    %vm1327 = vcmp.eq.s32.totalorder %v64, %v1081
    %vm1328 = vcmp.eq.s32.totalorder %v64, %v1085
    %vm1329 = vcmp.eq.s32.totalorder %v64, %v1089
    %vm1330 = vcmp.eq.s32.totalorder %v65, %v1029
    %vm1331 = vcmp.eq.s32.totalorder %v65, %v1033
    %vm1332 = vcmp.eq.s32.totalorder %v65, %v1037
    %vm1333 = vcmp.eq.s32.totalorder %v65, %v1041
    %vm1334 = vcmp.eq.s32.totalorder %v65, %v1045
    %vm1335 = vcmp.eq.s32.totalorder %v65, %v1049
    %vm1336 = vcmp.eq.s32.totalorder %v65, %v1053
    %vm1337 = vcmp.eq.s32.totalorder %v65, %v1057
    %vm1338 = vcmp.eq.s32.totalorder %v65, %v1061
    %vm1339 = vcmp.eq.s32.totalorder %v65, %v1065
    %vm1340 = vcmp.eq.s32.totalorder %v65, %v1069
    %vm1341 = vcmp.eq.s32.totalorder %v65, %v1073
    %vm1342 = vcmp.eq.s32.totalorder %v65, %v1077
    %vm1343 = vcmp.eq.s32.totalorder %v65, %v1081
    %vm1344 = vcmp.eq.s32.totalorder %v65, %v1085
    %vm1345 = vcmp.eq.s32.totalorder %v65, %v1089
    %v1346 = vsel %vm1090, 1, 0
    %v1347 = vsel %vm1091, 1, 0
    %v1348 = vsel %vm1092, 1, 0
    %v1349 = vsel %vm1093, 1, 0
    %v1350 = vsel %vm1094, 1, 0
    %v1351 = vsel %vm1095, 1, 0
    %v1352 = vsel %vm1096, 1, 0
    %v1353 = vsel %vm1097, 1, 0
    %v1354 = vsel %vm1098, 1, 0
    %v1355 = vsel %vm1099, 1, 0
    %v1356 = vsel %vm1100, 1, 0
    %v1357 = vsel %vm1101, 1, 0
    %v1358 = vsel %vm1102, 1, 0
    %v1359 = vsel %vm1103, 1, 0
    %v1360 = vsel %vm1104, 1, 0
    %v1361 = vsel %vm1105, 1, 0
    %v1362 = vsel %vm1106, 1, 0
    %v1363 = vsel %vm1107, 1, 0
    %v1364 = vsel %vm1108, 1, 0
    %v1365 = vsel %vm1109, 1, 0
    %v1366 = vsel %vm1110, 1, 0
    %v1367 = vsel %vm1111, 1, 0
    %v1368 = vsel %vm1112, 1, 0
    %v1369 = vsel %vm1113, 1, 0
    %v1370 = vsel %vm1114, 1, 0
    %v1371 = vsel %vm1115, 1, 0
    %v1372 = vsel %vm1116, 1, 0
    %v1373 = vsel %vm1117, 1, 0
    %v1374 = vsel %vm1118, 1, 0
    %v1375 = vsel %vm1119, 1, 0
    %v1376 = vsel %vm1120, 1, 0
    %v1377 = vsel %vm1121, 1, 0
    %v1378 = vsel %vm1122, 1, 0
    %v1379 = vsel %vm1123, 1, 0
    %v1380 = vsel %vm1124, 1, 0
    %v1381 = vsel %vm1125, 1, 0
    %v1382 = vsel %vm1126, 1, 0
    %v1383 = vsel %vm1127, 1, 0
    %v1384 = vsel %vm1128, 1, 0
    %v1385 = vsel %vm1129, 1, 0
    %v1386 = vsel %vm1130, 1, 0
    %v1387 = vsel %vm1131, 1, 0
    %v1388 = vsel %vm1132, 1, 0
    %v1389 = vsel %vm1133, 1, 0
    %v1390 = vsel %vm1134, 1, 0
    %v1391 = vsel %vm1135, 1, 0
    %v1392 = vsel %vm1136, 1, 0
    %v1393 = vsel %vm1137, 1, 0
    %v1394 = vsel %vm1138, 1, 0
    %v1395 = vsel %vm1139, 1, 0
    %v1396 = vsel %vm1140, 1, 0
    %v1397 = vsel %vm1141, 1, 0
    %v1398 = vsel %vm1142, 1, 0
    %v1399 = vsel %vm1143, 1, 0
    %v1400 = vsel %vm1144, 1, 0
    %v1401 = vsel %vm1145, 1, 0
    %v1402 = vsel %vm1146, 1, 0
    %v1403 = vsel %vm1147, 1, 0
    %v1404 = vsel %vm1148, 1, 0
    %v1405 = vsel %vm1149, 1, 0
    %v1406 = vsel %vm1150, 1, 0
    %v1407 = vsel %vm1151, 1, 0
    %v1408 = vsel %vm1152, 1, 0
    %v1409 = vsel %vm1153, 1, 0
    %v1410 = vsel %vm1154, 1, 0
    %v1411 = vsel %vm1155, 1, 0
    %v1412 = vsel %vm1156, 1, 0
    %v1413 = vsel %vm1157, 1, 0
    %v1414 = vsel %vm1158, 1, 0
    %v1415 = vsel %vm1159, 1, 0
    %v1416 = vsel %vm1160, 1, 0
    %v1417 = vsel %vm1161, 1, 0
    %v1418 = vsel %vm1162, 1, 0
    %v1419 = vsel %vm1163, 1, 0
    %v1420 = vsel %vm1164, 1, 0
    %v1421 = vsel %vm1165, 1, 0
    %v1422 = vsel %vm1166, 1, 0
    %v1423 = vsel %vm1167, 1, 0
    %v1424 = vsel %vm1168, 1, 0
    %v1425 = vsel %vm1169, 1, 0
    %v1426 = vsel %vm1170, 1, 0
    %v1427 = vsel %vm1171, 1, 0
    %v1428 = vsel %vm1172, 1, 0
    %v1429 = vsel %vm1173, 1, 0
    %v1430 = vsel %vm1174, 1, 0
    %v1431 = vsel %vm1175, 1, 0
    %v1432 = vsel %vm1176, 1, 0
    %v1433 = vsel %vm1177, 1, 0
    %v1434 = vsel %vm1178, 1, 0
    %v1435 = vsel %vm1179, 1, 0
    %v1436 = vsel %vm1180, 1, 0
    %v1437 = vsel %vm1181, 1, 0
    %v1438 = vsel %vm1182, 1, 0
    %v1439 = vsel %vm1183, 1, 0
    %v1440 = vsel %vm1184, 1, 0
    %v1441 = vsel %vm1185, 1, 0
    %v1442 = vsel %vm1186, 1, 0
    %v1443 = vsel %vm1187, 1, 0
    %v1444 = vsel %vm1188, 1, 0
    %v1445 = vsel %vm1189, 1, 0
    %v1446 = vsel %vm1190, 1, 0
    %v1447 = vsel %vm1191, 1, 0
    %v1448 = vsel %vm1192, 1, 0
    %v1449 = vsel %vm1193, 1, 0
    %v1450 = vsel %vm1194, 1, 0
    %v1451 = vsel %vm1195, 1, 0
    %v1452 = vsel %vm1196, 1, 0
    %v1453 = vsel %vm1197, 1, 0
    %v1454 = vsel %vm1198, 1, 0
    %v1455 = vsel %vm1199, 1, 0
    %v1456 = vsel %vm1200, 1, 0
    %v1457 = vsel %vm1201, 1, 0
    %v1458 = vsel %vm1202, 1, 0
    %v1459 = vsel %vm1203, 1, 0
    %v1460 = vsel %vm1204, 1, 0
    %v1461 = vsel %vm1205, 1, 0
    %v1462 = vsel %vm1206, 1, 0
    %v1463 = vsel %vm1207, 1, 0
    %v1464 = vsel %vm1208, 1, 0
    %v1465 = vsel %vm1209, 1, 0
    %v1466 = vsel %vm1210, 1, 0
    %v1467 = vsel %vm1211, 1, 0
    %v1468 = vsel %vm1212, 1, 0
    %v1469 = vsel %vm1213, 1, 0
    %v1470 = vsel %vm1214, 1, 0
    %v1471 = vsel %vm1215, 1, 0
    %v1472 = vsel %vm1216, 1, 0
    %v1473 = vsel %vm1217, 1, 0
    %v1474 = vsel %vm1218, 1, 0
    %v1475 = vsel %vm1219, 1, 0
    %v1476 = vsel %vm1220, 1, 0
    %v1477 = vsel %vm1221, 1, 0
    %v1478 = vsel %vm1222, 1, 0
    %v1479 = vsel %vm1223, 1, 0
    %v1480 = vsel %vm1224, 1, 0
    %v1481 = vsel %vm1225, 1, 0
    %v1482 = vsel %vm1226, 1, 0
    %v1483 = vsel %vm1227, 1, 0
    %v1484 = vsel %vm1228, 1, 0
    %v1485 = vsel %vm1229, 1, 0
    %v1486 = vsel %vm1230, 1, 0
    %v1487 = vsel %vm1231, 1, 0
    %v1488 = vsel %vm1232, 1, 0
    %v1489 = vsel %vm1233, 1, 0
    %v1490 = vsel %vm1234, 1, 0
    %v1491 = vsel %vm1235, 1, 0
    %v1492 = vsel %vm1236, 1, 0
    %v1493 = vsel %vm1237, 1, 0
    %v1494 = vsel %vm1238, 1, 0
    %v1495 = vsel %vm1239, 1, 0
    %v1496 = vsel %vm1240, 1, 0
    %v1497 = vsel %vm1241, 1, 0
    %v1498 = vsel %vm1242, 1, 0
    %v1499 = vsel %vm1243, 1, 0
    %v1500 = vsel %vm1244, 1, 0
    %v1501 = vsel %vm1245, 1, 0
    %v1502 = vsel %vm1246, 1, 0
    %v1503 = vsel %vm1247, 1, 0
    %v1504 = vsel %vm1248, 1, 0
    %v1505 = vsel %vm1249, 1, 0
    %v1506 = vsel %vm1250, 1, 0
    %v1507 = vsel %vm1251, 1, 0
    %v1508 = vsel %vm1252, 1, 0
    %v1509 = vsel %vm1253, 1, 0
    %v1510 = vsel %vm1254, 1, 0
    %v1511 = vsel %vm1255, 1, 0
    %v1512 = vsel %vm1256, 1, 0
    %v1513 = vsel %vm1257, 1, 0
    %v1514 = vsel %vm1258, 1, 0
    %v1515 = vsel %vm1259, 1, 0
    %v1516 = vsel %vm1260, 1, 0
    %v1517 = vsel %vm1261, 1, 0
    %v1518 = vsel %vm1262, 1, 0
    %v1519 = vsel %vm1263, 1, 0
    %v1520 = vsel %vm1264, 1, 0
    %v1521 = vsel %vm1265, 1, 0
    %v1522 = vsel %vm1266, 1, 0
    %v1523 = vsel %vm1267, 1, 0
    %v1524 = vsel %vm1268, 1, 0
    %v1525 = vsel %vm1269, 1, 0
    %v1526 = vsel %vm1270, 1, 0
    %v1527 = vsel %vm1271, 1, 0
    %v1528 = vsel %vm1272, 1, 0
    %v1529 = vsel %vm1273, 1, 0
    %v1530 = vsel %vm1274, 1, 0
    %v1531 = vsel %vm1275, 1, 0
    %v1532 = vsel %vm1276, 1, 0
    %v1533 = vsel %vm1277, 1, 0
    %v1534 = vsel %vm1278, 1, 0
    %v1535 = vsel %vm1279, 1, 0
    %v1536 = vsel %vm1280, 1, 0
    %v1537 = vsel %vm1281, 1, 0
    %v1538 = vsel %vm1282, 1, 0
    %v1539 = vsel %vm1283, 1, 0
    %v1540 = vsel %vm1284, 1, 0
    %v1541 = vsel %vm1285, 1, 0
    %v1542 = vsel %vm1286, 1, 0
    %v1543 = vsel %vm1287, 1, 0
    %v1544 = vsel %vm1288, 1, 0
    %v1545 = vsel %vm1289, 1, 0
    %v1546 = vsel %vm1290, 1, 0
    %v1547 = vsel %vm1291, 1, 0
    %v1548 = vsel %vm1292, 1, 0
    %v1549 = vsel %vm1293, 1, 0
    %v1550 = vsel %vm1294, 1, 0
    %v1551 = vsel %vm1295, 1, 0
    %v1552 = vsel %vm1296, 1, 0
    %v1553 = vsel %vm1297, 1, 0
    %v1554 = vsel %vm1298, 1, 0
    %v1555 = vsel %vm1299, 1, 0
    %v1556 = vsel %vm1300, 1, 0
    %v1557 = vsel %vm1301, 1, 0
    %v1558 = vsel %vm1302, 1, 0
    %v1559 = vsel %vm1303, 1, 0
    %v1560 = vsel %vm1304, 1, 0
    %v1561 = vsel %vm1305, 1, 0
    %v1562 = vsel %vm1306, 1, 0
    %v1563 = vsel %vm1307, 1, 0
    %v1564 = vsel %vm1308, 1, 0
    %v1565 = vsel %vm1309, 1, 0
    %v1566 = vsel %vm1310, 1, 0
    %v1567 = vsel %vm1311, 1, 0
    %v1568 = vsel %vm1312, 1, 0
    %v1569 = vsel %vm1313, 1, 0
    %v1570 = vsel %vm1314, 1, 0
    %v1571 = vsel %vm1315, 1, 0
    %v1572 = vsel %vm1316, 1, 0
    %v1573 = vsel %vm1317, 1, 0
    %v1574 = vsel %vm1318, 1, 0
    %v1575 = vsel %vm1319, 1, 0
    %v1576 = vsel %vm1320, 1, 0
    %v1577 = vsel %vm1321, 1, 0
    %v1578 = vsel %vm1322, 1, 0
    %v1579 = vsel %vm1323, 1, 0
    %v1580 = vsel %vm1324, 1, 0
    %v1581 = vsel %vm1325, 1, 0
    %v1582 = vsel %vm1326, 1, 0
    %v1583 = vsel %vm1327, 1, 0
    %v1584 = vsel %vm1328, 1, 0
    %v1585 = vsel %vm1329, 1, 0
    %v1586 = vsel %vm1330, 1, 0
    %v1587 = vsel %vm1331, 1, 0
    %v1588 = vsel %vm1332, 1, 0
    %v1589 = vsel %vm1333, 1, 0
    %v1590 = vsel %vm1334, 1, 0
    %v1591 = vsel %vm1335, 1, 0
    %v1592 = vsel %vm1336, 1, 0
    %v1593 = vsel %vm1337, 1, 0
    %v1594 = vsel %vm1338, 1, 0
    %v1595 = vsel %vm1339, 1, 0
    %v1596 = vsel %vm1340, 1, 0
    %v1597 = vsel %vm1341, 1, 0
    %v1598 = vsel %vm1342, 1, 0
    %v1599 = vsel %vm1343, 1, 0
    %v1600 = vsel %vm1344, 1, 0
    %v1601 = vsel %vm1345, 1, 0
    %v1602 = vcvt.s32.f32 %v1346
    %v1603 = vcvt.s32.f32 %v1347
    %v1604 = vcvt.s32.f32 %v1348
    %v1605 = vcvt.s32.f32 %v1349
    %v1606 = vcvt.s32.f32 %v1350
    %v1607 = vcvt.s32.f32 %v1351
    %v1608 = vcvt.s32.f32 %v1352
    %v1609 = vcvt.s32.f32 %v1353
    %v1610 = vcvt.s32.f32 %v1354
    %v1611 = vcvt.s32.f32 %v1355
    %v1612 = vcvt.s32.f32 %v1356
    %v1613 = vcvt.s32.f32 %v1357
    %v1614 = vcvt.s32.f32 %v1358
    %v1615 = vcvt.s32.f32 %v1359
    %v1616 = vcvt.s32.f32 %v1360
    %v1617 = vcvt.s32.f32 %v1361
    %v1618 = vcvt.s32.f32 %v1362
    %v1619 = vcvt.s32.f32 %v1363
    %v1620 = vcvt.s32.f32 %v1364
    %v1621 = vcvt.s32.f32 %v1365
    %v1622 = vcvt.s32.f32 %v1366
    %v1623 = vcvt.s32.f32 %v1367
    %v1624 = vcvt.s32.f32 %v1368
    %v1625 = vcvt.s32.f32 %v1369
    %v1626 = vcvt.s32.f32 %v1370
    %v1627 = vcvt.s32.f32 %v1371
    %v1628 = vcvt.s32.f32 %v1372
    %v1629 = vcvt.s32.f32 %v1373
    %v1630 = vcvt.s32.f32 %v1374
    %v1631 = vcvt.s32.f32 %v1375
    %v1632 = vcvt.s32.f32 %v1376
    %v1633 = vcvt.s32.f32 %v1377
    %v1634 = vcvt.s32.f32 %v1378
    %v1635 = vcvt.s32.f32 %v1379
    %v1636 = vcvt.s32.f32 %v1380
    %v1637 = vcvt.s32.f32 %v1381
    %v1638 = vcvt.s32.f32 %v1382
    %v1639 = vcvt.s32.f32 %v1383
    %v1640 = vcvt.s32.f32 %v1384
    %v1641 = vcvt.s32.f32 %v1385
    %v1642 = vcvt.s32.f32 %v1386
    %v1643 = vcvt.s32.f32 %v1387
    %v1644 = vcvt.s32.f32 %v1388
    %v1645 = vcvt.s32.f32 %v1389
    %v1646 = vcvt.s32.f32 %v1390
    %v1647 = vcvt.s32.f32 %v1391
    %v1648 = vcvt.s32.f32 %v1392
    %v1649 = vcvt.s32.f32 %v1393
    %v1650 = vcvt.s32.f32 %v1394
    %v1651 = vcvt.s32.f32 %v1395
    %v1652 = vcvt.s32.f32 %v1396
    %v1653 = vcvt.s32.f32 %v1397
    %v1654 = vcvt.s32.f32 %v1398
    %v1655 = vcvt.s32.f32 %v1399
    %v1656 = vcvt.s32.f32 %v1400
    %v1657 = vcvt.s32.f32 %v1401
    %v1658 = vcvt.s32.f32 %v1402
    %v1659 = vcvt.s32.f32 %v1403
    %v1660 = vcvt.s32.f32 %v1404
    %v1661 = vcvt.s32.f32 %v1405
    %v1662 = vcvt.s32.f32 %v1406
    %v1663 = vcvt.s32.f32 %v1407
    %v1664 = vcvt.s32.f32 %v1408
    %v1665 = vcvt.s32.f32 %v1409
    %v1666 = vcvt.s32.f32 %v1410
    %v1667 = vcvt.s32.f32 %v1411
    %v1668 = vcvt.s32.f32 %v1412
    %v1669 = vcvt.s32.f32 %v1413
    %v1670 = vcvt.s32.f32 %v1414
    %v1671 = vcvt.s32.f32 %v1415
    %v1672 = vcvt.s32.f32 %v1416
    %v1673 = vcvt.s32.f32 %v1417
    %v1674 = vcvt.s32.f32 %v1418
    %v1675 = vcvt.s32.f32 %v1419
    %v1676 = vcvt.s32.f32 %v1420
    %v1677 = vcvt.s32.f32 %v1421
    %v1678 = vcvt.s32.f32 %v1422
    %v1679 = vcvt.s32.f32 %v1423
    %v1680 = vcvt.s32.f32 %v1424
    %v1681 = vcvt.s32.f32 %v1425
    %v1682 = vcvt.s32.f32 %v1426
    %v1683 = vcvt.s32.f32 %v1427
    %v1684 = vcvt.s32.f32 %v1428
    %v1685 = vcvt.s32.f32 %v1429
    %v1686 = vcvt.s32.f32 %v1430
    %v1687 = vcvt.s32.f32 %v1431
    %v1688 = vcvt.s32.f32 %v1432
    %v1689 = vcvt.s32.f32 %v1433
    %v1690 = vcvt.s32.f32 %v1434
    %v1691 = vcvt.s32.f32 %v1435
    %v1692 = vcvt.s32.f32 %v1436
    %v1693 = vcvt.s32.f32 %v1437
    %v1694 = vcvt.s32.f32 %v1438
    %v1695 = vcvt.s32.f32 %v1439
    %v1696 = vcvt.s32.f32 %v1440
    %v1697 = vcvt.s32.f32 %v1441
    %v1698 = vcvt.s32.f32 %v1442
    %v1699 = vcvt.s32.f32 %v1443
    %v1700 = vcvt.s32.f32 %v1444
    %v1701 = vcvt.s32.f32 %v1445
    %v1702 = vcvt.s32.f32 %v1446
    %v1703 = vcvt.s32.f32 %v1447
    %v1704 = vcvt.s32.f32 %v1448
    %v1705 = vcvt.s32.f32 %v1449
    %v1706 = vcvt.s32.f32 %v1450
    %v1707 = vcvt.s32.f32 %v1451
    %v1708 = vcvt.s32.f32 %v1452
    %v1709 = vcvt.s32.f32 %v1453
    %v1710 = vcvt.s32.f32 %v1454
    %v1711 = vcvt.s32.f32 %v1455
    %v1712 = vcvt.s32.f32 %v1456
    %v1713 = vcvt.s32.f32 %v1457
    %v1714 = vcvt.s32.f32 %v1458
    %v1715 = vcvt.s32.f32 %v1459
    %v1716 = vcvt.s32.f32 %v1460
    %v1717 = vcvt.s32.f32 %v1461
    %v1718 = vcvt.s32.f32 %v1462
    %v1719 = vcvt.s32.f32 %v1463
    %v1720 = vcvt.s32.f32 %v1464
    %v1721 = vcvt.s32.f32 %v1465
    %v1722 = vcvt.s32.f32 %v1466
    %v1723 = vcvt.s32.f32 %v1467
    %v1724 = vcvt.s32.f32 %v1468
    %v1725 = vcvt.s32.f32 %v1469
    %v1726 = vcvt.s32.f32 %v1470
    %v1727 = vcvt.s32.f32 %v1471
    %v1728 = vcvt.s32.f32 %v1472
    %v1729 = vcvt.s32.f32 %v1473
    %v1730 = vcvt.s32.f32 %v1474
    %v1731 = vcvt.s32.f32 %v1475
    %v1732 = vcvt.s32.f32 %v1476
    %v1733 = vcvt.s32.f32 %v1477
    %v1734 = vcvt.s32.f32 %v1478
    %v1735 = vcvt.s32.f32 %v1479
    %v1736 = vcvt.s32.f32 %v1480
    %v1737 = vcvt.s32.f32 %v1481
    %v1738 = vcvt.s32.f32 %v1482
    %v1739 = vcvt.s32.f32 %v1483
    %v1740 = vcvt.s32.f32 %v1484
    %v1741 = vcvt.s32.f32 %v1485
    %v1742 = vcvt.s32.f32 %v1486
    %v1743 = vcvt.s32.f32 %v1487
    %v1744 = vcvt.s32.f32 %v1488
    %v1745 = vcvt.s32.f32 %v1489
    %v1746 = vcvt.s32.f32 %v1490
    %v1747 = vcvt.s32.f32 %v1491
    %v1748 = vcvt.s32.f32 %v1492
    %v1749 = vcvt.s32.f32 %v1493
    %v1750 = vcvt.s32.f32 %v1494
    %v1751 = vcvt.s32.f32 %v1495
    %v1752 = vcvt.s32.f32 %v1496
    %v1753 = vcvt.s32.f32 %v1497
    %v1754 = vcvt.s32.f32 %v1498
    %v1755 = vcvt.s32.f32 %v1499
    %v1756 = vcvt.s32.f32 %v1500
    %v1757 = vcvt.s32.f32 %v1501
    %v1758 = vcvt.s32.f32 %v1502
    %v1759 = vcvt.s32.f32 %v1503
    %v1760 = vcvt.s32.f32 %v1504
    %v1761 = vcvt.s32.f32 %v1505
    %v1762 = vcvt.s32.f32 %v1506
    %v1763 = vcvt.s32.f32 %v1507
    %v1764 = vcvt.s32.f32 %v1508
    %v1765 = vcvt.s32.f32 %v1509
    %v1766 = vcvt.s32.f32 %v1510
    %v1767 = vcvt.s32.f32 %v1511
    %v1768 = vcvt.s32.f32 %v1512
    %v1769 = vcvt.s32.f32 %v1513
    %v1770 = vcvt.s32.f32 %v1514
    %v1771 = vcvt.s32.f32 %v1515
    %v1772 = vcvt.s32.f32 %v1516
    %v1773 = vcvt.s32.f32 %v1517
    %v1774 = vcvt.s32.f32 %v1518
    %v1775 = vcvt.s32.f32 %v1519
    %v1776 = vcvt.s32.f32 %v1520
    %v1777 = vcvt.s32.f32 %v1521
    %v1778 = vcvt.s32.f32 %v1522
    %v1779 = vcvt.s32.f32 %v1523
    %v1780 = vcvt.s32.f32 %v1524
    %v1781 = vcvt.s32.f32 %v1525
    %v1782 = vcvt.s32.f32 %v1526
    %v1783 = vcvt.s32.f32 %v1527
    %v1784 = vcvt.s32.f32 %v1528
    %v1785 = vcvt.s32.f32 %v1529
    %v1786 = vcvt.s32.f32 %v1530
    %v1787 = vcvt.s32.f32 %v1531
    %v1788 = vcvt.s32.f32 %v1532
    %v1789 = vcvt.s32.f32 %v1533
    %v1790 = vcvt.s32.f32 %v1534
    %v1791 = vcvt.s32.f32 %v1535
    %v1792 = vcvt.s32.f32 %v1536
    %v1793 = vcvt.s32.f32 %v1537
    %v1794 = vcvt.s32.f32 %v1538
    %v1795 = vcvt.s32.f32 %v1539
    %v1796 = vcvt.s32.f32 %v1540
    %v1797 = vcvt.s32.f32 %v1541
    %v1798 = vcvt.s32.f32 %v1542
    %v1799 = vcvt.s32.f32 %v1543
    %v1800 = vcvt.s32.f32 %v1544
    %v1801 = vcvt.s32.f32 %v1545
    %v1802 = vcvt.s32.f32 %v1546
    %v1803 = vcvt.s32.f32 %v1547
    %v1804 = vcvt.s32.f32 %v1548
    %v1805 = vcvt.s32.f32 %v1549
    %v1806 = vcvt.s32.f32 %v1550
    %v1807 = vcvt.s32.f32 %v1551
    %v1808 = vcvt.s32.f32 %v1552
    %v1809 = vcvt.s32.f32 %v1553
    %v1810 = vcvt.s32.f32 %v1554
    %v1811 = vcvt.s32.f32 %v1555
    %v1812 = vcvt.s32.f32 %v1556
    %v1813 = vcvt.s32.f32 %v1557
    %v1814 = vcvt.s32.f32 %v1558
    %v1815 = vcvt.s32.f32 %v1559
    %v1816 = vcvt.s32.f32 %v1560
    %v1817 = vcvt.s32.f32 %v1561
    %v1818 = vcvt.s32.f32 %v1562
    %v1819 = vcvt.s32.f32 %v1563
    %v1820 = vcvt.s32.f32 %v1564
    %v1821 = vcvt.s32.f32 %v1565
    %v1822 = vcvt.s32.f32 %v1566
    %v1823 = vcvt.s32.f32 %v1567
    %v1824 = vcvt.s32.f32 %v1568
    %v1825 = vcvt.s32.f32 %v1569
    %v1826 = vcvt.s32.f32 %v1570
    %v1827 = vcvt.s32.f32 %v1571
    %v1828 = vcvt.s32.f32 %v1572
    %v1829 = vcvt.s32.f32 %v1573
    %v1830 = vcvt.s32.f32 %v1574
    %v1831 = vcvt.s32.f32 %v1575
    %v1832 = vcvt.s32.f32 %v1576
    %v1833 = vcvt.s32.f32 %v1577
    %v1834 = vcvt.s32.f32 %v1578
    %v1835 = vcvt.s32.f32 %v1579
    %v1836 = vcvt.s32.f32 %v1580
    %v1837 = vcvt.s32.f32 %v1581
    %v1838 = vcvt.s32.f32 %v1582
    %v1839 = vcvt.s32.f32 %v1583
    %v1840 = vcvt.s32.f32 %v1584
    %v1841 = vcvt.s32.f32 %v1585
    %v1842 = vcvt.s32.f32 %v1586
    %v1843 = vcvt.s32.f32 %v1587
    %v1844 = vcvt.s32.f32 %v1588
    %v1845 = vcvt.s32.f32 %v1589
    %v1846 = vcvt.s32.f32 %v1590
    %v1847 = vcvt.s32.f32 %v1591
    %v1848 = vcvt.s32.f32 %v1592
    %v1849 = vcvt.s32.f32 %v1593
    %v1850 = vcvt.s32.f32 %v1594
    %v1851 = vcvt.s32.f32 %v1595
    %v1852 = vcvt.s32.f32 %v1596
    %v1853 = vcvt.s32.f32 %v1597
    %v1854 = vcvt.s32.f32 %v1598
    %v1855 = vcvt.s32.f32 %v1599
    %v1856 = vcvt.s32.f32 %v1600
    %v1857 = vcvt.s32.f32 %v1601
    %v1858 = vpack.c.bf16 %v1618, %v1602
    %v1859 = vpack.c.bf16 %v1619, %v1603
    %v1860 = vpack.c.bf16 %v1620, %v1604
    %v1861 = vpack.c.bf16 %v1621, %v1605
    %v1862 = vpack.c.bf16 %v1622, %v1606
    %v1863 = vpack.c.bf16 %v1623, %v1607
    %v1864 = vpack.c.bf16 %v1624, %v1608
    %v1865 = vpack.c.bf16 %v1625, %v1609
    %v1866 = vpack.c.bf16 %v1626, %v1610
    %v1867 = vpack.c.bf16 %v1627, %v1611
    %v1868 = vpack.c.bf16 %v1628, %v1612
    %v1869 = vpack.c.bf16 %v1629, %v1613
    %v1870 = vpack.c.bf16 %v1630, %v1614
    %v1871 = vpack.c.bf16 %v1631, %v1615
    %v1872 = vpack.c.bf16 %v1632, %v1616
    %v1873 = vpack.c.bf16 %v1633, %v1617
    %v1874 = vpack.c.bf16 %v1650, %v1634
    %v1875 = vpack.c.bf16 %v1651, %v1635
    %v1876 = vpack.c.bf16 %v1652, %v1636
    %v1877 = vpack.c.bf16 %v1653, %v1637
    %v1878 = vpack.c.bf16 %v1654, %v1638
    %v1879 = vpack.c.bf16 %v1655, %v1639
    %v1880 = vpack.c.bf16 %v1656, %v1640
    %v1881 = vpack.c.bf16 %v1657, %v1641
    %v1882 = vpack.c.bf16 %v1658, %v1642
    %v1883 = vpack.c.bf16 %v1659, %v1643
    %v1884 = vpack.c.bf16 %v1660, %v1644
    %v1885 = vpack.c.bf16 %v1661, %v1645
    %v1886 = vpack.c.bf16 %v1662, %v1646
    %v1887 = vpack.c.bf16 %v1663, %v1647
    %v1888 = vpack.c.bf16 %v1664, %v1648
    %v1889 = vpack.c.bf16 %v1665, %v1649
    %v1890 = vpack.c.bf16 %v1682, %v1666
    %v1891 = vpack.c.bf16 %v1683, %v1667
    %v1892 = vpack.c.bf16 %v1684, %v1668
    %v1893 = vpack.c.bf16 %v1685, %v1669
    %v1894 = vpack.c.bf16 %v1686, %v1670
    %v1895 = vpack.c.bf16 %v1687, %v1671
    %v1896 = vpack.c.bf16 %v1688, %v1672
    %v1897 = vpack.c.bf16 %v1689, %v1673
    %v1898 = vpack.c.bf16 %v1690, %v1674
    %v1899 = vpack.c.bf16 %v1691, %v1675
    %v1900 = vpack.c.bf16 %v1692, %v1676
    %v1901 = vpack.c.bf16 %v1693, %v1677
    %v1902 = vpack.c.bf16 %v1694, %v1678
    %v1903 = vpack.c.bf16 %v1695, %v1679
    %v1904 = vpack.c.bf16 %v1696, %v1680
    %v1905 = vpack.c.bf16 %v1697, %v1681
    %v1906 = vpack.c.bf16 %v1714, %v1698
    %v1907 = vpack.c.bf16 %v1715, %v1699
    %v1908 = vpack.c.bf16 %v1716, %v1700
    %v1909 = vpack.c.bf16 %v1717, %v1701
    %v1910 = vpack.c.bf16 %v1718, %v1702
    %v1911 = vpack.c.bf16 %v1719, %v1703
    %v1912 = vpack.c.bf16 %v1720, %v1704
    %v1913 = vpack.c.bf16 %v1721, %v1705
    %v1914 = vpack.c.bf16 %v1722, %v1706
    %v1915 = vpack.c.bf16 %v1723, %v1707
    %v1916 = vpack.c.bf16 %v1724, %v1708
    %v1917 = vpack.c.bf16 %v1725, %v1709
    %v1918 = vpack.c.bf16 %v1726, %v1710
    %v1919 = vpack.c.bf16 %v1727, %v1711
    %v1920 = vpack.c.bf16 %v1728, %v1712
    %v1921 = vpack.c.bf16 %v1729, %v1713
    %v1922 = vpack.c.bf16 %v1746, %v1730
    %v1923 = vpack.c.bf16 %v1747, %v1731
    %v1924 = vpack.c.bf16 %v1748, %v1732
    %v1925 = vpack.c.bf16 %v1749, %v1733
    %v1926 = vpack.c.bf16 %v1750, %v1734
    %v1927 = vpack.c.bf16 %v1751, %v1735
    %v1928 = vpack.c.bf16 %v1752, %v1736
    %v1929 = vpack.c.bf16 %v1753, %v1737
    %v1930 = vpack.c.bf16 %v1754, %v1738
    %v1931 = vpack.c.bf16 %v1755, %v1739
    %v1932 = vpack.c.bf16 %v1756, %v1740
    %v1933 = vpack.c.bf16 %v1757, %v1741
    %v1934 = vpack.c.bf16 %v1758, %v1742
    %v1935 = vpack.c.bf16 %v1759, %v1743
    %v1936 = vpack.c.bf16 %v1760, %v1744
    %v1937 = vpack.c.bf16 %v1761, %v1745
    %v1938 = vpack.c.bf16 %v1778, %v1762
    %v1939 = vpack.c.bf16 %v1779, %v1763
    %v1940 = vpack.c.bf16 %v1780, %v1764
    %v1941 = vpack.c.bf16 %v1781, %v1765
    %v1942 = vpack.c.bf16 %v1782, %v1766
    %v1943 = vpack.c.bf16 %v1783, %v1767
    %v1944 = vpack.c.bf16 %v1784, %v1768
    %v1945 = vpack.c.bf16 %v1785, %v1769
    %v1946 = vpack.c.bf16 %v1786, %v1770
    %v1947 = vpack.c.bf16 %v1787, %v1771
    %v1948 = vpack.c.bf16 %v1788, %v1772
    %v1949 = vpack.c.bf16 %v1789, %v1773
    %v1950 = vpack.c.bf16 %v1790, %v1774
    %v1951 = vpack.c.bf16 %v1791, %v1775
    %v1952 = vpack.c.bf16 %v1792, %v1776
    %v1953 = vpack.c.bf16 %v1793, %v1777
    %v1954 = vpack.c.bf16 %v1810, %v1794
    %v1955 = vpack.c.bf16 %v1811, %v1795
    %v1956 = vpack.c.bf16 %v1812, %v1796
    %v1957 = vpack.c.bf16 %v1813, %v1797
    %v1958 = vpack.c.bf16 %v1814, %v1798
    %v1959 = vpack.c.bf16 %v1815, %v1799
    %v1960 = vpack.c.bf16 %v1816, %v1800
    %v1961 = vpack.c.bf16 %v1817, %v1801
    %v1962 = vpack.c.bf16 %v1818, %v1802
    %v1963 = vpack.c.bf16 %v1819, %v1803
    %v1964 = vpack.c.bf16 %v1820, %v1804
    %v1965 = vpack.c.bf16 %v1821, %v1805
    %v1966 = vpack.c.bf16 %v1822, %v1806
    %v1967 = vpack.c.bf16 %v1823, %v1807
    %v1968 = vpack.c.bf16 %v1824, %v1808
    %v1969 = vpack.c.bf16 %v1825, %v1809
    %v1970 = vpack.c.bf16 %v1842, %v1826
    %v1971 = vpack.c.bf16 %v1843, %v1827
    %v1972 = vpack.c.bf16 %v1844, %v1828
    %v1973 = vpack.c.bf16 %v1845, %v1829
    %v1974 = vpack.c.bf16 %v1846, %v1830
    %v1975 = vpack.c.bf16 %v1847, %v1831
    %v1976 = vpack.c.bf16 %v1848, %v1832
    %v1977 = vpack.c.bf16 %v1849, %v1833
    %v1978 = vpack.c.bf16 %v1850, %v1834
    %v1979 = vpack.c.bf16 %v1851, %v1835
    %v1980 = vpack.c.bf16 %v1852, %v1836
    %v1981 = vpack.c.bf16 %v1853, %v1837
    %v1982 = vpack.c.bf16 %v1854, %v1838
    %v1983 = vpack.c.bf16 %v1855, %v1839
    %v1984 = vpack.c.bf16 %v1856, %v1840
    %v1985 = vpack.c.bf16 %v1857, %v1841
    %v1986 = vsub.bf16 %v898, %v1858
    %v1987 = vsub.bf16 %v899, %v1859
    %v1988 = vsub.bf16 %v900, %v1860
    %v1989 = vsub.bf16 %v901, %v1861
    %v1990 = vsub.bf16 %v902, %v1862
    %v1991 = vsub.bf16 %v903, %v1863
    %v1992 = vsub.bf16 %v904, %v1864
    %v1993 = vsub.bf16 %v905, %v1865
    %v1994 = vsub.bf16 %v906, %v1866
    %v1995 = vsub.bf16 %v907, %v1867
    %v1996 = vsub.bf16 %v908, %v1868
    %v1997 = vsub.bf16 %v909, %v1869
    %v1998 = vsub.bf16 %v910, %v1870
    %v1999 = vsub.bf16 %v911, %v1871
    %v2000 = vsub.bf16 %v912, %v1872
    %v2001 = vsub.bf16 %v913, %v1873
    %v2002 = vsub.bf16 %v914, %v1874
    %v2003 = vsub.bf16 %v915, %v1875
    %v2004 = vsub.bf16 %v916, %v1876
    %v2005 = vsub.bf16 %v917, %v1877
    %v2006 = vsub.bf16 %v918, %v1878
    %v2007 = vsub.bf16 %v919, %v1879
    %v2008 = vsub.bf16 %v920, %v1880
    %v2009 = vsub.bf16 %v921, %v1881
    %v2010 = vsub.bf16 %v922, %v1882
    %v2011 = vsub.bf16 %v923, %v1883
    %v2012 = vsub.bf16 %v924, %v1884
    %v2013 = vsub.bf16 %v925, %v1885
    %v2014 = vsub.bf16 %v926, %v1886
    %v2015 = vsub.bf16 %v927, %v1887
    %v2016 = vsub.bf16 %v928, %v1888
    %v2017 = vsub.bf16 %v929, %v1889
    %v2018 = vsub.bf16 %v930, %v1890
    %v2019 = vsub.bf16 %v931, %v1891
    %v2020 = vsub.bf16 %v932, %v1892
    %v2021 = vsub.bf16 %v933, %v1893
    %v2022 = vsub.bf16 %v934, %v1894
    %v2023 = vsub.bf16 %v935, %v1895
    %v2024 = vsub.bf16 %v936, %v1896
    %v2025 = vsub.bf16 %v937, %v1897
    %v2026 = vsub.bf16 %v938, %v1898
    %v2027 = vsub.bf16 %v939, %v1899
    %v2028 = vsub.bf16 %v940, %v1900
    %v2029 = vsub.bf16 %v941, %v1901
    %v2030 = vsub.bf16 %v942, %v1902
    %v2031 = vsub.bf16 %v943, %v1903
    %v2032 = vsub.bf16 %v944, %v1904
    %v2033 = vsub.bf16 %v945, %v1905
    %v2034 = vsub.bf16 %v946, %v1906
    %v2035 = vsub.bf16 %v947, %v1907
    %v2036 = vsub.bf16 %v948, %v1908
    %v2037 = vsub.bf16 %v949, %v1909
    %v2038 = vsub.bf16 %v950, %v1910
    %v2039 = vsub.bf16 %v951, %v1911
    %v2040 = vsub.bf16 %v952, %v1912
    %v2041 = vsub.bf16 %v953, %v1913
    %v2042 = vsub.bf16 %v954, %v1914
    %v2043 = vsub.bf16 %v955, %v1915
    %v2044 = vsub.bf16 %v956, %v1916
    %v2045 = vsub.bf16 %v957, %v1917
    %v2046 = vsub.bf16 %v958, %v1918
    %v2047 = vsub.bf16 %v959, %v1919
    %v2048 = vsub.bf16 %v960, %v1920
    %v2049 = vsub.bf16 %v961, %v1921
    %v2050 = vsub.bf16 %v962, %v1922
    %v2051 = vsub.bf16 %v963, %v1923
    %v2052 = vsub.bf16 %v964, %v1924
    %v2053 = vsub.bf16 %v965, %v1925
    %v2054 = vsub.bf16 %v966, %v1926
    %v2055 = vsub.bf16 %v967, %v1927
    %v2056 = vsub.bf16 %v968, %v1928
    %v2057 = vsub.bf16 %v969, %v1929
    %v2058 = vsub.bf16 %v970, %v1930
    %v2059 = vsub.bf16 %v971, %v1931
    %v2060 = vsub.bf16 %v972, %v1932
    %v2061 = vsub.bf16 %v973, %v1933
    %v2062 = vsub.bf16 %v974, %v1934
    %v2063 = vsub.bf16 %v975, %v1935
    %v2064 = vsub.bf16 %v976, %v1936
    %v2065 = vsub.bf16 %v977, %v1937
    %v2066 = vsub.bf16 %v978, %v1938
    %v2067 = vsub.bf16 %v979, %v1939
    %v2068 = vsub.bf16 %v980, %v1940
    %v2069 = vsub.bf16 %v981, %v1941
    %v2070 = vsub.bf16 %v982, %v1942
    %v2071 = vsub.bf16 %v983, %v1943
    %v2072 = vsub.bf16 %v984, %v1944
    %v2073 = vsub.bf16 %v985, %v1945
    %v2074 = vsub.bf16 %v986, %v1946
    %v2075 = vsub.bf16 %v987, %v1947
    %v2076 = vsub.bf16 %v988, %v1948
    %v2077 = vsub.bf16 %v989, %v1949
    %v2078 = vsub.bf16 %v990, %v1950
    %v2079 = vsub.bf16 %v991, %v1951
    %v2080 = vsub.bf16 %v992, %v1952
    %v2081 = vsub.bf16 %v993, %v1953
    %v2082 = vsub.bf16 %v994, %v1954
    %v2083 = vsub.bf16 %v995, %v1955
    %v2084 = vsub.bf16 %v996, %v1956
    %v2085 = vsub.bf16 %v997, %v1957
    %v2086 = vsub.bf16 %v998, %v1958
    %v2087 = vsub.bf16 %v999, %v1959
    %v2088 = vsub.bf16 %v1000, %v1960
    %v2089 = vsub.bf16 %v1001, %v1961
    %v2090 = vsub.bf16 %v1002, %v1962
    %v2091 = vsub.bf16 %v1003, %v1963
    %v2092 = vsub.bf16 %v1004, %v1964
    %v2093 = vsub.bf16 %v1005, %v1965
    %v2094 = vsub.bf16 %v1006, %v1966
    %v2095 = vsub.bf16 %v1007, %v1967
    %v2096 = vsub.bf16 %v1008, %v1968
    %v2097 = vsub.bf16 %v1009, %v1969
    %v2098 = vsub.bf16 %v1010, %v1970
    %v2099 = vsub.bf16 %v1011, %v1971
    %v2100 = vsub.bf16 %v1012, %v1972
    %v2101 = vsub.bf16 %v1013, %v1973
    %v2102 = vsub.bf16 %v1014, %v1974
    %v2103 = vsub.bf16 %v1015, %v1975
    %v2104 = vsub.bf16 %v1016, %v1976
    %v2105 = vsub.bf16 %v1017, %v1977
    %v2106 = vsub.bf16 %v1018, %v1978
    %v2107 = vsub.bf16 %v1019, %v1979
    %v2108 = vsub.bf16 %v1020, %v1980
    %v2109 = vsub.bf16 %v1021, %v1981
    %v2110 = vsub.bf16 %v1022, %v1982
    %v2111 = vsub.bf16 %v1023, %v1983
    %v2112 = vsub.bf16 %v1024, %v1984
    %v2113 = vsub.bf16 %v1025, %v1985
    %v2114 = vld [vmem:[#allocation5] sm:$0xf]
    %v2115 = vld [vmem:[#allocation5 + $0x4] sm:$0x1]
    %v2118 = vunpack.c.l.b16 %v2114
    %v2119 = vunpack.c.l.b16 %v2115
    %v2120 = vpack.c.b16 %v2119, %v2118
    %2122 = vmatprep.subr.bf16.mxu0 %v1987
    %2123 = vmatpush1.bf16.msra.mxu0 %v1986
    %2124 = vmatprep.subr.bf16.mxu0 %v2003
    %2125 = vmatpush1.bf16.msra.mxu0 %v2002
    %2126 = vmatprep.subr.bf16.mxu0 %v2019
    %2127 = vmatpush1.bf16.msra.mxu0 %v2018
    %2128 = vmatprep.subr.bf16.mxu0 %v2035
    %2129 = vmatpush1.bf16.msra.mxu0 %v2034
    %2130 = vmatprep.subr.bf16.mxu0 %v2051
    %2131 = vmatpush1.bf16.msra.mxu0 %v2050
    %2132 = vmatprep.subr.bf16.mxu0 %v2067
    %2133 = vmatpush1.bf16.msra.mxu0 %v2066
    %2134 = vmatprep.subr.bf16.mxu0 %v2083
    %2135 = vmatpush1.bf16.msra.mxu0 %v2082
    %2136 = vmatprep.subr.bf16.mxu0 %v2099
    %2137 = vmatpush1.bf16.msra.mxu0 %v2098
    %2138 = vmatprep.subr.bf16.mxu0 0
    %2139 = vmatpush1.bf16.msra.mxu0 0
    %2140 = vmatprep.subr.bf16.mxu0 0
    %2141 = vmatpush1.bf16.msra.mxu0 0
    %2142 = vmatprep.subr.bf16.mxu0 0
    %2143 = vmatpush1.bf16.msra.mxu0 0
    %2144 = vmatprep.subr.bf16.mxu0 0
    %2145 = vmatpush1.bf16.msra.mxu0 0
    %2146 = vmatprep.subr.bf16.mxu0 0
    %2147 = vmatpush1.bf16.msra.mxu0 0
    %2148 = vmatprep.subr.bf16.mxu0 0
    %2149 = vmatpush1.bf16.msra.mxu0 0
    %2150 = vmatprep.subr.bf16.mxu0 0
    %2151 = vmatpush1.bf16.msra.mxu0 0
    %2152 = vmatprep.subr.bf16.mxu0 0
    %2153 = vmatpush1.bf16.msra.mxu0 0
    %2154 = vmatprep.mubr.bf16.mxu0 0
    %2155 = vmatmul.mubr.bf16.gmra.mrb[0].mxu0 %v2120
    %v2156 = vpop.f32.mrb[0].mxu0
    %v2157 = vadd.f32 0.0, %v2156
    %v2158 = vpop.f32.mrb[0].mxu0
    %v2159 = vadd.f32 0.0, %v2158
    %v2160 = vpop.f32.mrb[0].mxu0
    %v2161 = vadd.f32 0.0, %v2160
    %v2162 = vpop.f32.mrb[0].mxu0
    %v2163 = vadd.f32 0.0, %v2162
    %2164 = vdwg.mxu0
    %2165 = vmatprep.subr.bf16.mxu0 %v1989
    %2166 = vmatpush1.bf16.msra.mxu0 %v1988
    %2167 = vmatprep.subr.bf16.mxu0 %v2005
    %2168 = vmatpush1.bf16.msra.mxu0 %v2004
    %2169 = vmatprep.subr.bf16.mxu0 %v2021
    %2170 = vmatpush1.bf16.msra.mxu0 %v2020
    %2171 = vmatprep.subr.bf16.mxu0 %v2037
    %2172 = vmatpush1.bf16.msra.mxu0 %v2036
    %2173 = vmatprep.subr.bf16.mxu0 %v2053
    %2174 = vmatpush1.bf16.msra.mxu0 %v2052
    %2175 = vmatprep.subr.bf16.mxu0 %v2069
    %2176 = vmatpush1.bf16.msra.mxu0 %v2068
    %2177 = vmatprep.subr.bf16.mxu0 %v2085
    %2178 = vmatpush1.bf16.msra.mxu0 %v2084
    %2179 = vmatprep.subr.bf16.mxu0 %v2101
    %2180 = vmatpush1.bf16.msra.mxu0 %v2100
    %2181 = vmatprep.subr.bf16.mxu0 0
    %2182 = vmatpush1.bf16.msra.mxu0 0
    %2183 = vmatprep.subr.bf16.mxu0 0
    %2184 = vmatpush1.bf16.msra.mxu0 0
    %2185 = vmatprep.subr.bf16.mxu0 0
    %2186 = vmatpush1.bf16.msra.mxu0 0
    %2187 = vmatprep.subr.bf16.mxu0 0
    %2188 = vmatpush1.bf16.msra.mxu0 0
    %2189 = vmatprep.subr.bf16.mxu0 0
    %2190 = vmatpush1.bf16.msra.mxu0 0
    %2191 = vmatprep.subr.bf16.mxu0 0
    %2192 = vmatpush1.bf16.msra.mxu0 0
    %2193 = vmatprep.subr.bf16.mxu0 0
    %2194 = vmatpush1.bf16.msra.mxu0 0
    %2195 = vmatprep.subr.bf16.mxu0 0
    %2196 = vmatpush1.bf16.msra.mxu0 0
    %2197 = vmatprep.mubr.bf16.mxu0 0
    %2198 = vmatmul.mubr.bf16.gmra.mrb[0].mxu0 %v2120
    %v2199 = vpop.f32.mrb[0].mxu0
    %v2200 = vadd.f32 0.0, %v2199
    %v2201 = vpop.f32.mrb[0].mxu0
    %v2202 = vadd.f32 0.0, %v2201
    %v2203 = vpop.f32.mrb[0].mxu0
    %v2204 = vadd.f32 0.0, %v2203
    %v2205 = vpop.f32.mrb[0].mxu0
    %v2206 = vadd.f32 0.0, %v2205
    %2207 = vdwg.mxu0
    %2208 = vmatprep.subr.bf16.mxu0 %v1991
    %2209 = vmatpush1.bf16.msra.mxu0 %v1990
    %2210 = vmatprep.subr.bf16.mxu0 %v2007
    %2211 = vmatpush1.bf16.msra.mxu0 %v2006
    %2212 = vmatprep.subr.bf16.mxu0 %v2023
    %2213 = vmatpush1.bf16.msra.mxu0 %v2022
    %2214 = vmatprep.subr.bf16.mxu0 %v2039
    %2215 = vmatpush1.bf16.msra.mxu0 %v2038
    %2216 = vmatprep.subr.bf16.mxu0 %v2055
    %2217 = vmatpush1.bf16.msra.mxu0 %v2054
    %2218 = vmatprep.subr.bf16.mxu0 %v2071
    %2219 = vmatpush1.bf16.msra.mxu0 %v2070
    %2220 = vmatprep.subr.bf16.mxu0 %v2087
    %2221 = vmatpush1.bf16.msra.mxu0 %v2086
    %2222 = vmatprep.subr.bf16.mxu0 %v2103
    %2223 = vmatpush1.bf16.msra.mxu0 %v2102
    %2224 = vmatprep.subr.bf16.mxu0 0
    %2225 = vmatpush1.bf16.msra.mxu0 0
    %2226 = vmatprep.subr.bf16.mxu0 0
    %2227 = vmatpush1.bf16.msra.mxu0 0
    %2228 = vmatprep.subr.bf16.mxu0 0
    %2229 = vmatpush1.bf16.msra.mxu0 0
    %2230 = vmatprep.subr.bf16.mxu0 0
    %2231 = vmatpush1.bf16.msra.mxu0 0
    %2232 = vmatprep.subr.bf16.mxu0 0
    %2233 = vmatpush1.bf16.msra.mxu0 0
    %2234 = vmatprep.subr.bf16.mxu0 0
    %2235 = vmatpush1.bf16.msra.mxu0 0
    %2236 = vmatprep.subr.bf16.mxu0 0
    %2237 = vmatpush1.bf16.msra.mxu0 0
    %2238 = vmatprep.subr.bf16.mxu0 0
    %2239 = vmatpush1.bf16.msra.mxu0 0
    %2240 = vmatprep.mubr.bf16.mxu0 0
    %2241 = vmatmul.mubr.bf16.gmra.mrb[0].mxu0 %v2120
    %v2242 = vpop.f32.mrb[0].mxu0
    %v2243 = vadd.f32 0.0, %v2242
    %v2244 = vpop.f32.mrb[0].mxu0
    %v2245 = vadd.f32 0.0, %v2244
    %v2246 = vpop.f32.mrb[0].mxu0
    %v2247 = vadd.f32 0.0, %v2246
    %v2248 = vpop.f32.mrb[0].mxu0
    %v2249 = vadd.f32 0.0, %v2248
    %2250 = vdwg.mxu0
    %2251 = vmatprep.subr.bf16.mxu0 %v1993
    %2252 = vmatpush1.bf16.msra.mxu0 %v1992
    %2253 = vmatprep.subr.bf16.mxu0 %v2009
    %2254 = vmatpush1.bf16.msra.mxu0 %v2008
    %2255 = vmatprep.subr.bf16.mxu0 %v2025
    %2256 = vmatpush1.bf16.msra.mxu0 %v2024
    %2257 = vmatprep.subr.bf16.mxu0 %v2041
    %2258 = vmatpush1.bf16.msra.mxu0 %v2040
    %2259 = vmatprep.subr.bf16.mxu0 %v2057
    %2260 = vmatpush1.bf16.msra.mxu0 %v2056
    %2261 = vmatprep.subr.bf16.mxu0 %v2073
    %2262 = vmatpush1.bf16.msra.mxu0 %v2072
    %2263 = vmatprep.subr.bf16.mxu0 %v2089
    %2264 = vmatpush1.bf16.msra.mxu0 %v2088
    %2265 = vmatprep.subr.bf16.mxu0 %v2105
    %2266 = vmatpush1.bf16.msra.mxu0 %v2104
    %2267 = vmatprep.subr.bf16.mxu0 0
    %2268 = vmatpush1.bf16.msra.mxu0 0
    %2269 = vmatprep.subr.bf16.mxu0 0
    %2270 = vmatpush1.bf16.msra.mxu0 0
    %2271 = vmatprep.subr.bf16.mxu0 0
    %2272 = vmatpush1.bf16.msra.mxu0 0
    %2273 = vmatprep.subr.bf16.mxu0 0
    %2274 = vmatpush1.bf16.msra.mxu0 0
    %2275 = vmatprep.subr.bf16.mxu0 0
    %2276 = vmatpush1.bf16.msra.mxu0 0
    %2277 = vmatprep.subr.bf16.mxu0 0
    %2278 = vmatpush1.bf16.msra.mxu0 0
    %2279 = vmatprep.subr.bf16.mxu0 0
    %2280 = vmatpush1.bf16.msra.mxu0 0
    %2281 = vmatprep.subr.bf16.mxu0 0
    %2282 = vmatpush1.bf16.msra.mxu0 0
    %2283 = vmatprep.mubr.bf16.mxu0 0
    %2284 = vmatmul.mubr.bf16.gmra.mrb[0].mxu0 %v2120
    %v2285 = vpop.f32.mrb[0].mxu0
    %v2286 = vadd.f32 0.0, %v2285
    %v2287 = vpop.f32.mrb[0].mxu0
    %v2288 = vadd.f32 0.0, %v2287
    %v2289 = vpop.f32.mrb[0].mxu0
    %v2290 = vadd.f32 0.0, %v2289
    %v2291 = vpop.f32.mrb[0].mxu0
    %v2292 = vadd.f32 0.0, %v2291
    %2293 = vdwg.mxu0
    %2294 = vmatprep.subr.bf16.mxu0 %v1995
    %2295 = vmatpush1.bf16.msra.mxu0 %v1994
    %2296 = vmatprep.subr.bf16.mxu0 %v2011
    %2297 = vmatpush1.bf16.msra.mxu0 %v2010
    %2298 = vmatprep.subr.bf16.mxu0 %v2027
    %2299 = vmatpush1.bf16.msra.mxu0 %v2026
    %2300 = vmatprep.subr.bf16.mxu0 %v2043
    %2301 = vmatpush1.bf16.msra.mxu0 %v2042
    %2302 = vmatprep.subr.bf16.mxu0 %v2059
    %2303 = vmatpush1.bf16.msra.mxu0 %v2058
    %2304 = vmatprep.subr.bf16.mxu0 %v2075
    %2305 = vmatpush1.bf16.msra.mxu0 %v2074
    %2306 = vmatprep.subr.bf16.mxu0 %v2091
    %2307 = vmatpush1.bf16.msra.mxu0 %v2090
    %2308 = vmatprep.subr.bf16.mxu0 %v2107
    %2309 = vmatpush1.bf16.msra.mxu0 %v2106
    %2310 = vmatprep.subr.bf16.mxu0 0
    %2311 = vmatpush1.bf16.msra.mxu0 0
    %2312 = vmatprep.subr.bf16.mxu0 0
    %2313 = vmatpush1.bf16.msra.mxu0 0
    %2314 = vmatprep.subr.bf16.mxu0 0
    %2315 = vmatpush1.bf16.msra.mxu0 0
    %2316 = vmatprep.subr.bf16.mxu0 0
    %2317 = vmatpush1.bf16.msra.mxu0 0
    %2318 = vmatprep.subr.bf16.mxu0 0
    %2319 = vmatpush1.bf16.msra.mxu0 0
    %2320 = vmatprep.subr.bf16.mxu0 0
    %2321 = vmatpush1.bf16.msra.mxu0 0
    %2322 = vmatprep.subr.bf16.mxu0 0
    %2323 = vmatpush1.bf16.msra.mxu0 0
    %2324 = vmatprep.subr.bf16.mxu0 0
    %2325 = vmatpush1.bf16.msra.mxu0 0
    %2326 = vmatprep.mubr.bf16.mxu0 0
    %2327 = vmatmul.mubr.bf16.gmra.mrb[0].mxu0 %v2120
    %v2328 = vpop.f32.mrb[0].mxu0
    %v2329 = vadd.f32 0.0, %v2328
    %v2330 = vpop.f32.mrb[0].mxu0
    %v2331 = vadd.f32 0.0, %v2330
    %v2332 = vpop.f32.mrb[0].mxu0
    %v2333 = vadd.f32 0.0, %v2332
    %v2334 = vpop.f32.mrb[0].mxu0
    %v2335 = vadd.f32 0.0, %v2334
    %2336 = vdwg.mxu0
    %2337 = vmatprep.subr.bf16.mxu0 %v1997
    %2338 = vmatpush1.bf16.msra.mxu0 %v1996
    %2339 = vmatprep.subr.bf16.mxu0 %v2013
    %2340 = vmatpush1.bf16.msra.mxu0 %v2012
    %2341 = vmatprep.subr.bf16.mxu0 %v2029
    %2342 = vmatpush1.bf16.msra.mxu0 %v2028
    %2343 = vmatprep.subr.bf16.mxu0 %v2045
    %2344 = vmatpush1.bf16.msra.mxu0 %v2044
    %2345 = vmatprep.subr.bf16.mxu0 %v2061
    %2346 = vmatpush1.bf16.msra.mxu0 %v2060
    %2347 = vmatprep.subr.bf16.mxu0 %v2077
    %2348 = vmatpush1.bf16.msra.mxu0 %v2076
    %2349 = vmatprep.subr.bf16.mxu0 %v2093
    %2350 = vmatpush1.bf16.msra.mxu0 %v2092
    %2351 = vmatprep.subr.bf16.mxu0 %v2109
    %2352 = vmatpush1.bf16.msra.mxu0 %v2108
    %2353 = vmatprep.subr.bf16.mxu0 0
    %2354 = vmatpush1.bf16.msra.mxu0 0
    %2355 = vmatprep.subr.bf16.mxu0 0
    %2356 = vmatpush1.bf16.msra.mxu0 0
    %2357 = vmatprep.subr.bf16.mxu0 0
    %2358 = vmatpush1.bf16.msra.mxu0 0
    %2359 = vmatprep.subr.bf16.mxu0 0
    %2360 = vmatpush1.bf16.msra.mxu0 0
    %2361 = vmatprep.subr.bf16.mxu0 0
    %2362 = vmatpush1.bf16.msra.mxu0 0
    %2363 = vmatprep.subr.bf16.mxu0 0
    %2364 = vmatpush1.bf16.msra.mxu0 0
    %2365 = vmatprep.subr.bf16.mxu0 0
    %2366 = vmatpush1.bf16.msra.mxu0 0
    %2367 = vmatprep.subr.bf16.mxu0 0
    %2368 = vmatpush1.bf16.msra.mxu0 0
    %2369 = vmatprep.mubr.bf16.mxu0 0
    %2370 = vmatmul.mubr.bf16.gmra.mrb[0].mxu0 %v2120
    %v2371 = vpop.f32.mrb[0].mxu0
    %v2372 = vadd.f32 0.0, %v2371
    %v2373 = vpop.f32.mrb[0].mxu0
    %v2374 = vadd.f32 0.0, %v2373
    %v2375 = vpop.f32.mrb[0].mxu0
    %v2376 = vadd.f32 0.0, %v2375
    %v2377 = vpop.f32.mrb[0].mxu0
    %v2378 = vadd.f32 0.0, %v2377
    %2379 = vdwg.mxu0
    %2380 = vmatprep.subr.bf16.mxu0 %v1999
    %2381 = vmatpush1.bf16.msra.mxu0 %v1998
    %2382 = vmatprep.subr.bf16.mxu0 %v2015
    %2383 = vmatpush1.bf16.msra.mxu0 %v2014
    %2384 = vmatprep.subr.bf16.mxu0 %v2031
    %2385 = vmatpush1.bf16.msra.mxu0 %v2030
    %2386 = vmatprep.subr.bf16.mxu0 %v2047
    %2387 = vmatpush1.bf16.msra.mxu0 %v2046
    %2388 = vmatprep.subr.bf16.mxu0 %v2063
    %2389 = vmatpush1.bf16.msra.mxu0 %v2062
    %2390 = vmatprep.subr.bf16.mxu0 %v2079
    %2391 = vmatpush1.bf16.msra.mxu0 %v2078
    %2392 = vmatprep.subr.bf16.mxu0 %v2095
    %2393 = vmatpush1.bf16.msra.mxu0 %v2094
    %2394 = vmatprep.subr.bf16.mxu0 %v2111
    %2395 = vmatpush1.bf16.msra.mxu0 %v2110
    %2396 = vmatprep.subr.bf16.mxu0 0
    %2397 = vmatpush1.bf16.msra.mxu0 0
    %2398 = vmatprep.subr.bf16.mxu0 0
    %2399 = vmatpush1.bf16.msra.mxu0 0
    %2400 = vmatprep.subr.bf16.mxu0 0
    %2401 = vmatpush1.bf16.msra.mxu0 0
    %2402 = vmatprep.subr.bf16.mxu0 0
    %2403 = vmatpush1.bf16.msra.mxu0 0
    %2404 = vmatprep.subr.bf16.mxu0 0
    %2405 = vmatpush1.bf16.msra.mxu0 0
    %2406 = vmatprep.subr.bf16.mxu0 0
    %2407 = vmatpush1.bf16.msra.mxu0 0
    %2408 = vmatprep.subr.bf16.mxu0 0
    %2409 = vmatpush1.bf16.msra.mxu0 0
    %2410 = vmatprep.subr.bf16.mxu0 0
    %2411 = vmatpush1.bf16.msra.mxu0 0
    %2412 = vmatprep.mubr.bf16.mxu0 0
    %2413 = vmatmul.mubr.bf16.gmra.mrb[0].mxu0 %v2120
    %v2414 = vpop.f32.mrb[0].mxu0
    %v2415 = vadd.f32 0.0, %v2414
    %v2416 = vpop.f32.mrb[0].mxu0
    %v2417 = vadd.f32 0.0, %v2416
    %v2418 = vpop.f32.mrb[0].mxu0
    %v2419 = vadd.f32 0.0, %v2418
    %v2420 = vpop.f32.mrb[0].mxu0
    %v2421 = vadd.f32 0.0, %v2420
    %2422 = vdwg.mxu0
    %2423 = vmatprep.subr.bf16.mxu0 %v2001
    %2424 = vmatpush1.bf16.msra.mxu0 %v2000
    %2425 = vmatprep.subr.bf16.mxu0 %v2017
    %2426 = vmatpush1.bf16.msra.mxu0 %v2016
    %2427 = vmatprep.subr.bf16.mxu0 %v2033
    %2428 = vmatpush1.bf16.msra.mxu0 %v2032
    %2429 = vmatprep.subr.bf16.mxu0 %v2049
    %2430 = vmatpush1.bf16.msra.mxu0 %v2048
    %2431 = vmatprep.subr.bf16.mxu0 %v2065
    %2432 = vmatpush1.bf16.msra.mxu0 %v2064
    %2433 = vmatprep.subr.bf16.mxu0 %v2081
    %2434 = vmatpush1.bf16.msra.mxu0 %v2080
    %2435 = vmatprep.subr.bf16.mxu0 %v2097
    %2436 = vmatpush1.bf16.msra.mxu0 %v2096
    %2437 = vmatprep.subr.bf16.mxu0 %v2113
    %2438 = vmatpush1.bf16.msra.mxu0 %v2112
    %2439 = vmatprep.subr.bf16.mxu0 0
    %2440 = vmatpush1.bf16.msra.mxu0 0
    %2441 = vmatprep.subr.bf16.mxu0 0
    %2442 = vmatpush1.bf16.msra.mxu0 0
    %2443 = vmatprep.subr.bf16.mxu0 0
    %2444 = vmatpush1.bf16.msra.mxu0 0
    %2445 = vmatprep.subr.bf16.mxu0 0
    %2446 = vmatpush1.bf16.msra.mxu0 0
    %2447 = vmatprep.subr.bf16.mxu0 0
    %2448 = vmatpush1.bf16.msra.mxu0 0
    %2449 = vmatprep.subr.bf16.mxu0 0
    %2450 = vmatpush1.bf16.msra.mxu0 0
    %2451 = vmatprep.subr.bf16.mxu0 0
    %2452 = vmatpush1.bf16.msra.mxu0 0
    %2453 = vmatprep.subr.bf16.mxu0 0
    %2454 = vmatpush1.bf16.msra.mxu0 0
    %2455 = vmatprep.mubr.bf16.mxu0 0
    %2456 = vmatmul.mubr.bf16.gmra.mrb[0].mxu0 %v2120
    %v2457 = vpop.f32.mrb[0].mxu0
    %v2458 = vadd.f32 0.0, %v2457
    %v2459 = vpop.f32.mrb[0].mxu0
    %v2460 = vadd.f32 0.0, %v2459
    %v2461 = vpop.f32.mrb[0].mxu0
    %v2462 = vadd.f32 0.0, %v2461
    %v2463 = vpop.f32.mrb[0].mxu0
    %v2464 = vadd.f32 0.0, %v2463
    %2465 = vdwg.mxu0
    %v2482 = vrot.slane %v2157, 3
    %v2483 = vrot.slane %v2159, 3
    %v2484 = vrot.slane %v2200, 3
    %v2485 = vrot.slane %v2202, 3
    %v2486 = vrot.slane %v2243, 3
    %v2487 = vrot.slane %v2245, 3
    %v2488 = vrot.slane %v2286, 3
    %v2489 = vrot.slane %v2288, 3
    %v2490 = vrot.slane %v2329, 3
    %v2491 = vrot.slane %v2331, 3
    %v2492 = vrot.slane %v2372, 3
    %v2493 = vrot.slane %v2374, 3
    %v2494 = vrot.slane %v2415, 3
    %v2495 = vrot.slane %v2417, 3
    %v2496 = vrot.slane %v2458, 3
    %v2497 = vrot.slane %v2460, 3
    %v2514 = vadd.f32 %v2157, %v2482
    %v2515 = vadd.f32 %v2159, %v2483
    %v2516 = vadd.f32 %v2200, %v2484
    %v2517 = vadd.f32 %v2202, %v2485
    %v2518 = vadd.f32 %v2243, %v2486
    %v2519 = vadd.f32 %v2245, %v2487
    %v2520 = vadd.f32 %v2286, %v2488
    %v2521 = vadd.f32 %v2288, %v2489
    %v2522 = vadd.f32 %v2329, %v2490
    %v2523 = vadd.f32 %v2331, %v2491
    %v2524 = vadd.f32 %v2372, %v2492
    %v2525 = vadd.f32 %v2374, %v2493
    %v2526 = vadd.f32 %v2415, %v2494
    %v2527 = vadd.f32 %v2417, %v2495
    %v2528 = vadd.f32 %v2458, %v2496
    %v2529 = vadd.f32 %v2460, %v2497
    %vm2546 = vcmask 1041408
    %v2547 = vrot.slane %v2157, 6
    %v2548 = vrot.slane %v2161, 6
    %v2549 = vsel %vm2546, %v2547, %v2548
    %v2550 = vrot.slane %v2159, 6
    %v2551 = vrot.slane %v2163, 6
    %v2552 = vsel %vm2546, %v2550, %v2551
    %v2553 = vrot.slane %v2200, 6
    %v2554 = vrot.slane %v2204, 6
    %v2555 = vsel %vm2546, %v2553, %v2554
    %v2556 = vrot.slane %v2202, 6
    %v2557 = vrot.slane %v2206, 6
    %v2558 = vsel %vm2546, %v2556, %v2557
    %v2559 = vrot.slane %v2243, 6
    %v2560 = vrot.slane %v2247, 6
    %v2561 = vsel %vm2546, %v2559, %v2560
    %v2562 = vrot.slane %v2245, 6
    %v2563 = vrot.slane %v2249, 6
    %v2564 = vsel %vm2546, %v2562, %v2563
    %v2565 = vrot.slane %v2286, 6
    %v2566 = vrot.slane %v2290, 6
    %v2567 = vsel %vm2546, %v2565, %v2566
    %v2568 = vrot.slane %v2288, 6
    %v2569 = vrot.slane %v2292, 6
    %v2570 = vsel %vm2546, %v2568, %v2569
    %v2571 = vrot.slane %v2329, 6
    %v2572 = vrot.slane %v2333, 6
    %v2573 = vsel %vm2546, %v2571, %v2572
    %v2574 = vrot.slane %v2331, 6
    %v2575 = vrot.slane %v2335, 6
    %v2576 = vsel %vm2546, %v2574, %v2575
    %v2577 = vrot.slane %v2372, 6
    %v2578 = vrot.slane %v2376, 6
    %v2579 = vsel %vm2546, %v2577, %v2578
    %v2580 = vrot.slane %v2374, 6
    %v2581 = vrot.slane %v2378, 6
    %v2582 = vsel %vm2546, %v2580, %v2581
    %v2583 = vrot.slane %v2415, 6
    %v2584 = vrot.slane %v2419, 6
    %v2585 = vsel %vm2546, %v2583, %v2584
    %v2586 = vrot.slane %v2417, 6
    %v2587 = vrot.slane %v2421, 6
    %v2588 = vsel %vm2546, %v2586, %v2587
    %v2589 = vrot.slane %v2458, 6
    %v2590 = vrot.slane %v2462, 6
    %v2591 = vsel %vm2546, %v2589, %v2590
    %v2592 = vrot.slane %v2460, 6
    %v2593 = vrot.slane %v2464, 6
    %v2594 = vsel %vm2546, %v2592, %v2593
    %v2611 = vadd.f32 %v2514, %v2549
    %v2612 = vadd.f32 %v2515, %v2552
    %v2613 = vadd.f32 %v2516, %v2555
    %v2614 = vadd.f32 %v2517, %v2558
    %v2615 = vadd.f32 %v2518, %v2561
    %v2616 = vadd.f32 %v2519, %v2564
    %v2617 = vadd.f32 %v2520, %v2567
    %v2618 = vadd.f32 %v2521, %v2570
    %v2619 = vadd.f32 %v2522, %v2573
    %v2620 = vadd.f32 %v2523, %v2576
    %v2621 = vadd.f32 %v2524, %v2579
    %v2622 = vadd.f32 %v2525, %v2582
    %v2623 = vadd.f32 %v2526, %v2585
    %v2624 = vadd.f32 %v2527, %v2588
    %v2625 = vadd.f32 %v2528, %v2591
    %v2626 = vadd.f32 %v2529, %v2594
    %v2627 = vmul.f32 %v2611, %v2611
    %v2628 = vmul.f32 %v2612, %v2612
    %v2629 = vmul.f32 %v2613, %v2613
    %v2630 = vmul.f32 %v2614, %v2614
    %v2631 = vmul.f32 %v2615, %v2615
    %v2632 = vmul.f32 %v2616, %v2616
    %v2633 = vmul.f32 %v2617, %v2617
    %v2634 = vmul.f32 %v2618, %v2618
    %v2635 = vmul.f32 %v2619, %v2619
    %v2636 = vmul.f32 %v2620, %v2620
    %v2637 = vmul.f32 %v2621, %v2621
    %v2638 = vmul.f32 %v2622, %v2622
    %v2639 = vmul.f32 %v2623, %v2623
    %v2640 = vmul.f32 %v2624, %v2624
    %v2641 = vmul.f32 %v2625, %v2625
    %v2642 = vmul.f32 %v2626, %v2626
    %vm2643 = vcmask 1042432
    %v2644 = vsel %vm2643, %v2627, 0.0
    %v2645 = vrot.slane %v2644, 4
    %v2646 = vadd.f32 %v2644, %v2645
    %v2647 = vrot.slane %v2646, 2
    %v2648 = vadd.f32 %v2646, %v2647
    %v2649 = vrot.slane %v2648, 1
    %v2650 = vadd.f32 %v2648, %v2649
    %v2651 = vsel %vm2643, %v2628, 0.0
    %v2652 = vrot.slane %v2651, 4
    %v2653 = vadd.f32 %v2651, %v2652
    %v2654 = vrot.slane %v2653, 2
    %v2655 = vadd.f32 %v2653, %v2654
    %v2656 = vrot.slane %v2655, 1
    %v2657 = vadd.f32 %v2655, %v2656
    %v2658 = vsel %vm2643, %v2629, 0.0
    %v2659 = vrot.slane %v2658, 4
    %v2660 = vadd.f32 %v2658, %v2659
    %v2661 = vrot.slane %v2660, 2
    %v2662 = vadd.f32 %v2660, %v2661
    %v2663 = vrot.slane %v2662, 1
    %v2664 = vadd.f32 %v2662, %v2663
    %v2665 = vsel %vm2643, %v2630, 0.0
    %v2666 = vrot.slane %v2665, 4
    %v2667 = vadd.f32 %v2665, %v2666
    %v2668 = vrot.slane %v2667, 2
    %v2669 = vadd.f32 %v2667, %v2668
    %v2670 = vrot.slane %v2669, 1
    %v2671 = vadd.f32 %v2669, %v2670
    %v2672 = vsel %vm2643, %v2631, 0.0
    %v2673 = vrot.slane %v2672, 4
    %v2674 = vadd.f32 %v2672, %v2673
    %v2675 = vrot.slane %v2674, 2
    %v2676 = vadd.f32 %v2674, %v2675
    %v2677 = vrot.slane %v2676, 1
    %v2678 = vadd.f32 %v2676, %v2677
    %v2679 = vsel %vm2643, %v2632, 0.0
    %v2680 = vrot.slane %v2679, 4
    %v2681 = vadd.f32 %v2679, %v2680
    %v2682 = vrot.slane %v2681, 2
    %v2683 = vadd.f32 %v2681, %v2682
    %v2684 = vrot.slane %v2683, 1
    %v2685 = vadd.f32 %v2683, %v2684
    %v2686 = vsel %vm2643, %v2633, 0.0
    %v2687 = vrot.slane %v2686, 4
    %v2688 = vadd.f32 %v2686, %v2687
    %v2689 = vrot.slane %v2688, 2
    %v2690 = vadd.f32 %v2688, %v2689
    %v2691 = vrot.slane %v2690, 1
    %v2692 = vadd.f32 %v2690, %v2691
    %v2693 = vsel %vm2643, %v2634, 0.0
    %v2694 = vrot.slane %v2693, 4
    %v2695 = vadd.f32 %v2693, %v2694
    %v2696 = vrot.slane %v2695, 2
    %v2697 = vadd.f32 %v2695, %v2696
    %v2698 = vrot.slane %v2697, 1
    %v2699 = vadd.f32 %v2697, %v2698
    %v2700 = vsel %vm2643, %v2635, 0.0
    %v2701 = vrot.slane %v2700, 4
    %v2702 = vadd.f32 %v2700, %v2701
    %v2703 = vrot.slane %v2702, 2
    %v2704 = vadd.f32 %v2702, %v2703
    %v2705 = vrot.slane %v2704, 1
    %v2706 = vadd.f32 %v2704, %v2705
    %v2707 = vsel %vm2643, %v2636, 0.0
    %v2708 = vrot.slane %v2707, 4
    %v2709 = vadd.f32 %v2707, %v2708
    %v2710 = vrot.slane %v2709, 2
    %v2711 = vadd.f32 %v2709, %v2710
    %v2712 = vrot.slane %v2711, 1
    %v2713 = vadd.f32 %v2711, %v2712
    %v2714 = vsel %vm2643, %v2637, 0.0
    %v2715 = vrot.slane %v2714, 4
    %v2716 = vadd.f32 %v2714, %v2715
    %v2717 = vrot.slane %v2716, 2
    %v2718 = vadd.f32 %v2716, %v2717
    %v2719 = vrot.slane %v2718, 1
    %v2720 = vadd.f32 %v2718, %v2719
    %v2721 = vsel %vm2643, %v2638, 0.0
    %v2722 = vrot.slane %v2721, 4
    %v2723 = vadd.f32 %v2721, %v2722
    %v2724 = vrot.slane %v2723, 2
    %v2725 = vadd.f32 %v2723, %v2724
    %v2726 = vrot.slane %v2725, 1
    %v2727 = vadd.f32 %v2725, %v2726
    %v2728 = vsel %vm2643, %v2639, 0.0
    %v2729 = vrot.slane %v2728, 4
    %v2730 = vadd.f32 %v2728, %v2729
    %v2731 = vrot.slane %v2730, 2
    %v2732 = vadd.f32 %v2730, %v2731
    %v2733 = vrot.slane %v2732, 1
    %v2734 = vadd.f32 %v2732, %v2733
    %v2735 = vsel %vm2643, %v2640, 0.0
    %v2736 = vrot.slane %v2735, 4
    %v2737 = vadd.f32 %v2735, %v2736
    %v2738 = vrot.slane %v2737, 2
    %v2739 = vadd.f32 %v2737, %v2738
    %v2740 = vrot.slane %v2739, 1
    %v2741 = vadd.f32 %v2739, %v2740
    %v2742 = vsel %vm2643, %v2641, 0.0
    %v2743 = vrot.slane %v2742, 4
    %v2744 = vadd.f32 %v2742, %v2743
    %v2745 = vrot.slane %v2744, 2
    %v2746 = vadd.f32 %v2744, %v2745
    %v2747 = vrot.slane %v2746, 1
    %v2748 = vadd.f32 %v2746, %v2747
    %v2749 = vsel %vm2643, %v2642, 0.0
    %v2750 = vrot.slane %v2749, 4
    %v2751 = vadd.f32 %v2749, %v2750
    %v2752 = vrot.slane %v2751, 2
    %v2753 = vadd.f32 %v2751, %v2752
    %v2754 = vrot.slane %v2753, 1
    %v2755 = vadd.f32 %v2753, %v2754
    %v2756 = vrsqrt.pop %v2650
    %v2757 = vmul.f32 %v2650, %v2756
    %vm2758 = vcmp.eq.f32.partialorder %v2650, inf
    %v2759 = vsel %vm2758, %v2650, %v2757
    %vm2760 = vcmp.eq.f32.partialorder %v2650, 0.0
    %v2761 = vand.u32 %v2650, 2147483648
    %v2762 = vsel %vm2760, %v2761, %v2759
    %v2763 = vrsqrt.pop %v2657
    %v2764 = vmul.f32 %v2657, %v2763
    %vm2765 = vcmp.eq.f32.partialorder %v2657, inf
    %v2766 = vsel %vm2765, %v2657, %v2764
    %vm2767 = vcmp.eq.f32.partialorder %v2657, 0.0
    %v2768 = vand.u32 %v2657, 2147483648
    %v2769 = vsel %vm2767, %v2768, %v2766
    %v2770 = vrsqrt.pop %v2664
    %v2771 = vmul.f32 %v2664, %v2770
    %vm2772 = vcmp.eq.f32.partialorder %v2664, inf
    %v2773 = vsel %vm2772, %v2664, %v2771
    %vm2774 = vcmp.eq.f32.partialorder %v2664, 0.0
    %v2775 = vand.u32 %v2664, 2147483648
    %v2776 = vsel %vm2774, %v2775, %v2773
    %v2777 = vrsqrt.pop %v2671
    %v2778 = vmul.f32 %v2671, %v2777
    %vm2779 = vcmp.eq.f32.partialorder %v2671, inf
    %v2780 = vsel %vm2779, %v2671, %v2778
    %vm2781 = vcmp.eq.f32.partialorder %v2671, 0.0
    %v2782 = vand.u32 %v2671, 2147483648
    %v2783 = vsel %vm2781, %v2782, %v2780
    %v2784 = vrsqrt.pop %v2678
    %v2785 = vmul.f32 %v2678, %v2784
    %vm2786 = vcmp.eq.f32.partialorder %v2678, inf
    %v2787 = vsel %vm2786, %v2678, %v2785
    %vm2788 = vcmp.eq.f32.partialorder %v2678, 0.0
    %v2789 = vand.u32 %v2678, 2147483648
    %v2790 = vsel %vm2788, %v2789, %v2787
    %v2791 = vrsqrt.pop %v2685
    %v2792 = vmul.f32 %v2685, %v2791
    %vm2793 = vcmp.eq.f32.partialorder %v2685, inf
    %v2794 = vsel %vm2793, %v2685, %v2792
    %vm2795 = vcmp.eq.f32.partialorder %v2685, 0.0
    %v2796 = vand.u32 %v2685, 2147483648
    %v2797 = vsel %vm2795, %v2796, %v2794
    %v2798 = vrsqrt.pop %v2692
    %v2799 = vmul.f32 %v2692, %v2798
    %vm2800 = vcmp.eq.f32.partialorder %v2692, inf
    %v2801 = vsel %vm2800, %v2692, %v2799
    %vm2802 = vcmp.eq.f32.partialorder %v2692, 0.0
    %v2803 = vand.u32 %v2692, 2147483648
    %v2804 = vsel %vm2802, %v2803, %v2801
    %v2805 = vrsqrt.pop %v2699
    %v2806 = vmul.f32 %v2699, %v2805
    %vm2807 = vcmp.eq.f32.partialorder %v2699, inf
    %v2808 = vsel %vm2807, %v2699, %v2806
    %vm2809 = vcmp.eq.f32.partialorder %v2699, 0.0
    %v2810 = vand.u32 %v2699, 2147483648
    %v2811 = vsel %vm2809, %v2810, %v2808
    %v2812 = vrsqrt.pop %v2706
    %v2813 = vmul.f32 %v2706, %v2812
    %vm2814 = vcmp.eq.f32.partialorder %v2706, inf
    %v2815 = vsel %vm2814, %v2706, %v2813
    %vm2816 = vcmp.eq.f32.partialorder %v2706, 0.0
    %v2817 = vand.u32 %v2706, 2147483648
    %v2818 = vsel %vm2816, %v2817, %v2815
    %v2819 = vrsqrt.pop %v2713
    %v2820 = vmul.f32 %v2713, %v2819
    %vm2821 = vcmp.eq.f32.partialorder %v2713, inf
    %v2822 = vsel %vm2821, %v2713, %v2820
    %vm2823 = vcmp.eq.f32.partialorder %v2713, 0.0
    %v2824 = vand.u32 %v2713, 2147483648
    %v2825 = vsel %vm2823, %v2824, %v2822
    %v2826 = vrsqrt.pop %v2720
    %v2827 = vmul.f32 %v2720, %v2826
    %vm2828 = vcmp.eq.f32.partialorder %v2720, inf
    %v2829 = vsel %vm2828, %v2720, %v2827
    %vm2830 = vcmp.eq.f32.partialorder %v2720, 0.0
    %v2831 = vand.u32 %v2720, 2147483648
    %v2832 = vsel %vm2830, %v2831, %v2829
    %v2833 = vrsqrt.pop %v2727
    %v2834 = vmul.f32 %v2727, %v2833
    %vm2835 = vcmp.eq.f32.partialorder %v2727, inf
    %v2836 = vsel %vm2835, %v2727, %v2834
    %vm2837 = vcmp.eq.f32.partialorder %v2727, 0.0
    %v2838 = vand.u32 %v2727, 2147483648
    %v2839 = vsel %vm2837, %v2838, %v2836
    %v2840 = vrsqrt.pop %v2734
    %v2841 = vmul.f32 %v2734, %v2840
    %vm2842 = vcmp.eq.f32.partialorder %v2734, inf
    %v2843 = vsel %vm2842, %v2734, %v2841
    %vm2844 = vcmp.eq.f32.partialorder %v2734, 0.0
    %v2845 = vand.u32 %v2734, 2147483648
    %v2846 = vsel %vm2844, %v2845, %v2843
    %v2847 = vrsqrt.pop %v2741
    %v2848 = vmul.f32 %v2741, %v2847
    %vm2849 = vcmp.eq.f32.partialorder %v2741, inf
    %v2850 = vsel %vm2849, %v2741, %v2848
    %vm2851 = vcmp.eq.f32.partialorder %v2741, 0.0
    %v2852 = vand.u32 %v2741, 2147483648
    %v2853 = vsel %vm2851, %v2852, %v2850
    %v2854 = vrsqrt.pop %v2748
    %v2855 = vmul.f32 %v2748, %v2854
    %vm2856 = vcmp.eq.f32.partialorder %v2748, inf
    %v2857 = vsel %vm2856, %v2748, %v2855
    %vm2858 = vcmp.eq.f32.partialorder %v2748, 0.0
    %v2859 = vand.u32 %v2748, 2147483648
    %v2860 = vsel %vm2858, %v2859, %v2857
    %v2861 = vrsqrt.pop %v2755
    %v2862 = vmul.f32 %v2755, %v2861
    %vm2863 = vcmp.eq.f32.partialorder %v2755, inf
    %v2864 = vsel %vm2863, %v2755, %v2862
    %vm2865 = vcmp.eq.f32.partialorder %v2755, 0.0
    %v2866 = vand.u32 %v2755, 2147483648
    %v2867 = vsel %vm2865, %v2866, %v2864
    %v2868 = vadd.f32 %v2762, 1.0
    %v2869 = vadd.f32 %v2769, 1.0
    %v2870 = vadd.f32 %v2776, 1.0
    %v2871 = vadd.f32 %v2783, 1.0
    %v2872 = vadd.f32 %v2790, 1.0
    %v2873 = vadd.f32 %v2797, 1.0
    %v2874 = vadd.f32 %v2804, 1.0
    %v2875 = vadd.f32 %v2811, 1.0
    %v2876 = vadd.f32 %v2818, 1.0
    %v2877 = vadd.f32 %v2825, 1.0
    %v2878 = vadd.f32 %v2832, 1.0
    %v2879 = vadd.f32 %v2839, 1.0
    %v2880 = vadd.f32 %v2846, 1.0
    %v2881 = vadd.f32 %v2853, 1.0
    %v2882 = vadd.f32 %v2860, 1.0
    %v2883 = vadd.f32 %v2867, 1.0
    %v2884 = vrcp.pop %v2868
    %v2885 = vrcp.pop %v2869
    %v2886 = vrcp.pop %v2870
    %v2887 = vrcp.pop %v2871
    %v2888 = vrcp.pop %v2872
    %v2889 = vrcp.pop %v2873
    %v2890 = vrcp.pop %v2874
    %v2891 = vrcp.pop %v2875
    %v2892 = vrcp.pop %v2876
    %v2893 = vrcp.pop %v2877
    %v2894 = vrcp.pop %v2878
    %v2895 = vrcp.pop %v2879
    %v2896 = vrcp.pop %v2880
    %v2897 = vrcp.pop %v2881
    %v2898 = vrcp.pop %v2882
    %v2899 = vrcp.pop %v2883
    %v2916 = vcombine.low %v2762, %v2769
    %v2917 = vcombine.low %v2776, %v2783
    %v2918 = vcombine.low %v2790, %v2797
    %v2919 = vcombine.low %v2804, %v2811
    %v2921 = vunpack.c.l.s4 1966171168
    %v2922 = vunpack.c.0.s8 %v2921
    %v2923 = vlaneseq
    %v2924 = vshrl.u32 %v2923, 7
    %v2925 = vsub.s32 %v2922, %v2924
    %v2926 = vrot.slane %v2916, %v2925
    %v2928 = vunpack.c.l.s4 1966171168
    %v2929 = vunpack.c.0.s8 %v2928
    %v2930 = vlaneseq
    %v2931 = vshrl.u32 %v2930, 7
    %v2932 = vsub.s32 %v2929, %v2931
    %v2933 = vrot.slane %v2917, %v2932
    %v2935 = vunpack.c.l.s4 1966171168
    %v2936 = vunpack.c.0.s8 %v2935
    %v2937 = vlaneseq
    %v2938 = vshrl.u32 %v2937, 7
    %v2939 = vsub.s32 %v2936, %v2938
    %v2940 = vrot.slane %v2918, %v2939
    %v2942 = vunpack.c.l.s4 1966171168
    %v2943 = vunpack.c.0.s8 %v2942
    %v2944 = vlaneseq
    %v2945 = vshrl.u32 %v2944, 7
    %v2946 = vsub.s32 %v2943, %v2945
    %v2947 = vrot.slane %v2919, %v2946
    %v2948 = vcombine.low %v2926, %v2933
    %v2949 = vcombine.low %v2940, %v2947
    %v2951 = vunpack.c.l.s4 1966171168
    %v2952 = vunpack.c.0.s8 %v2951
    %v2953 = vlaneseq
    %v2954 = vshrl.u32 %v2953, 7
    %v2955 = vsub.s32 %v2952, %v2954
    %v2956 = vrot.slane %v2948, %v2955
    %v2958 = vunpack.c.l.s4 1966171168
    %v2959 = vunpack.c.0.s8 %v2958
    %v2960 = vlaneseq
    %v2961 = vshrl.u32 %v2960, 7
    %v2962 = vsub.s32 %v2959, %v2961
    %v2963 = vrot.slane %v2949, %v2962
    %v2964 = vcombine.low %v2956, %v2963
    %v2965 = vcombine.low %v2818, %v2825
    %v2966 = vcombine.low %v2832, %v2839
    %v2967 = vcombine.low %v2846, %v2853
    %v2968 = vcombine.low %v2860, %v2867
    %v2970 = vunpack.c.l.s4 1966171168
    %v2971 = vunpack.c.0.s8 %v2970
    %v2972 = vlaneseq
    %v2973 = vshrl.u32 %v2972, 7
    %v2974 = vsub.s32 %v2971, %v2973
    %v2975 = vrot.slane %v2965, %v2974
    %v2977 = vunpack.c.l.s4 1966171168
    %v2978 = vunpack.c.0.s8 %v2977
    %v2979 = vlaneseq
    %v2980 = vshrl.u32 %v2979, 7
    %v2981 = vsub.s32 %v2978, %v2980
    %v2982 = vrot.slane %v2966, %v2981
    %v2984 = vunpack.c.l.s4 1966171168
    %v2985 = vunpack.c.0.s8 %v2984
    %v2986 = vlaneseq
    %v2987 = vshrl.u32 %v2986, 7
    %v2988 = vsub.s32 %v2985, %v2987
    %v2989 = vrot.slane %v2967, %v2988
    %v2991 = vunpack.c.l.s4 1966171168
    %v2992 = vunpack.c.0.s8 %v2991
    %v2993 = vlaneseq
    %v2994 = vshrl.u32 %v2993, 7
    %v2995 = vsub.s32 %v2992, %v2994
    %v2996 = vrot.slane %v2968, %v2995
    %v2997 = vcombine.low %v2975, %v2982
    %v2998 = vcombine.low %v2989, %v2996
    %v3000 = vunpack.c.l.s4 1966171168
    %v3001 = vunpack.c.0.s8 %v3000
    %v3002 = vlaneseq
    %v3003 = vshrl.u32 %v3002, 7
    %v3004 = vsub.s32 %v3001, %v3003
    %v3005 = vrot.slane %v2997, %v3004
    %v3007 = vunpack.c.l.s4 1966171168
    %v3008 = vunpack.c.0.s8 %v3007
    %v3009 = vlaneseq
    %v3010 = vshrl.u32 %v3009, 7
    %v3011 = vsub.s32 %v3008, %v3010
    %v3012 = vrot.slane %v2998, %v3011
    %v3013 = vcombine.low %v3005, %v3012
    %3016 = vst [vmem:[#allocation7] sm:$0xff] %v2964
    %3017 = vst [vmem:[#allocation7 + $0x8] sm:$0xff] %v3013
    %v3018 = vmul.f32 %v2611, %v2884
    %v3019 = vmul.f32 %v2612, %v2885
    %v3020 = vmul.f32 %v2613, %v2886
    %v3021 = vmul.f32 %v2614, %v2887
    %v3022 = vmul.f32 %v2615, %v2888
    %v3023 = vmul.f32 %v2616, %v2889
    %v3024 = vmul.f32 %v2617, %v2890
    %v3025 = vmul.f32 %v2618, %v2891
    %v3026 = vmul.f32 %v2619, %v2892
    %v3027 = vmul.f32 %v2620, %v2893
    %v3028 = vmul.f32 %v2621, %v2894
    %v3029 = vmul.f32 %v2622, %v2895
    %v3030 = vmul.f32 %v2623, %v2896
    %v3031 = vmul.f32 %v2624, %v2897
    %v3032 = vmul.f32 %v2625, %v2898
    %v3033 = vmul.f32 %v2626, %v2899
    %v3050 = vcombine.low %v3018, %v3019
    %v3051 = vcombine.low %v3020, %v3021
    %v3052 = vcombine.low %v3022, %v3023
    %v3053 = vcombine.low %v3024, %v3025
    %v3054 = vcombine.low %v3026, %v3027
    %v3055 = vcombine.low %v3028, %v3029
    %v3056 = vcombine.low %v3030, %v3031
    %v3057 = vcombine.low %v3032, %v3033
    %3066 = vst [vmem:[#allocation8] sm:$0x77] %v3050
    %3067 = vst [vmem:[#allocation8 + $0x8] sm:$0x77] %v3051
    %3068 = vst [vmem:[#allocation8 + $0x10] sm:$0x77] %v3052
    %3069 = vst [vmem:[#allocation8 + $0x18] sm:$0x77] %v3053
    %3070 = vst [vmem:[#allocation8 + $0x20] sm:$0x77] %v3054
    %3071 = vst [vmem:[#allocation8 + $0x28] sm:$0x77] %v3055
    %3072 = vst [vmem:[#allocation8 + $0x30] sm:$0x77] %v3056
    %3073 = vst [vmem:[#allocation8 + $0x38] sm:$0x77] %v3057
    // Predicated region
    $region18: #{tpu_custom_call.1} parent=1 // pred_check
      _
    $region19: #{tpu_custom_call.1} parent=1 // pred_check_branch
      %3075 = sbr.rel (0) target = $region21
    $region20: #{tpu_custom_call.1} parent=1 // pred_region
      %s3077 = ssub.s32 256, 256
      %3078 = vsyncadd [#allocation4], %s3077
      %s3080 = sshll.u32 [#allocation7], 4
      %s3081 = int_to_ptr.vmem [resolvable:$true] %s3080
      %3083 = dma.vmem_to_hbm [thread:$0]  %s3081, 256, %s2, [#allocation4]
    $region21: #{tpu_custom_call.1} parent=1 // pred_fallthru
      _
    // Predicated region
    $region22: #{tpu_custom_call.1} parent=1 // pred_check
      _
    $region23: #{tpu_custom_call.1} parent=1 // pred_check_branch
      %3085 = sbr.rel (0) target = $region25
    $region24: #{tpu_custom_call.1} parent=1 // pred_region
      %s3087 = ssub.s32 1024, 1024
      %3088 = vsyncadd [#allocation9], %s3087
      %s3090 = sshll.u32 [#allocation8], 4
      %s3091 = int_to_ptr.vmem [resolvable:$true] %s3090
      %3093 = dma.vmem_to_hbm [thread:$0]  %s3091, 1024, %s3, [#allocation9]
    $region25: #{tpu_custom_call.1} parent=1 // pred_fallthru
      _
    // Predicated region
    $region26: #{tpu_custom_call.1} parent=1 // pred_check
      _
    $region27: #{tpu_custom_call.1} parent=1 // pred_check_branch
      %3095 = sbr.rel (0) target = $region29
    $region28: #{tpu_custom_call.1} parent=1 // pred_region
      %3096 = dma.done [#allocation4], 256
    $region29: #{tpu_custom_call.1} parent=1 // pred_fallthru
      _
    // Predicated region
    $region30: #{tpu_custom_call.1} parent=1 // pred_check
      _
    $region31: #{tpu_custom_call.1} parent=1 // pred_check_branch
      %3098 = sbr.rel (0) target = $region33
    $region32: #{tpu_custom_call.1} parent=1 // pred_region
      %3099 = dma.done [#allocation9], 1024
    $region33: #{tpu_custom_call.1} parent=1 // pred_fallthru
      _
    %3100 = vsyncpa [#allocation3], 1
    %3101 = vsyncpa [#allocation6], 1
    %3102 = vsyncpa [#allocation4], 1
    %3103 = vsyncpa [#allocation9], 1

</llo_original>
